<compile_context>
chip_gen: v6e
topology: v6e:2x2x1
jax: 0.10.0
libtpu: 0.0.40
codegen_flags: <defaults>
</compile_context>

<pallas_src>
import numpy as np
import jax
import jax.numpy as jnp
from jax import lax
from jax.experimental import pallas as pl
from jax.experimental.pallas import tpu as pltpu


def _make_divisible(v, divisor, min_value=None):
    if min_value is None:
        min_value = divisor
    new_v = max(min_value, int(v + divisor / 2) // divisor * divisor)
    if new_v < 0.9 * v:
        new_v += divisor
    return new_v


def _gelu(x, approx):
    if approx:
        # tanh approximation -> EUP tanh; offloads the VALU-bound erf polynomial.
        return 0.5 * x * (1.0 + jnp.tanh(0.7978845608028654 * (x + 0.044715 * x * x * x)))
    # exact erf-based GELU, matches torch nn.GELU() default
    return 0.5 * x * (1.0 + lax.erf(x * (1.0 / np.sqrt(2.0))))


# --------------------------------------------------------------------------------------
# pass 1: BN-folded 1x1 expand + GELU + depthwise 3x3 (+BN3) + GELU, per H tile.
# Also emits per-tile partial sums for the SE global average pool (two-pass pooling).
# --------------------------------------------------------------------------------------
def _make_expand_dw_kernel(approx_gelu):
    def kernel(
        x_ref,                    # (1, H+2, W, Cin) f32   (whole padded image, resident per n)
        w1_ref, b1_ref,           # (Cin, Chid) mm_dtype, (1, Chid) f32    bn1/bn2-folded 1x1
        wdw_ref, bdw_ref,         # (9, Chid) mm_dtype,  (1, Chid) f32     bn3-folded dw taps
        hdw_ref,                  # out: (1, TH, W, Chid) store_dtype
        psum_ref,                 # out: (1, 1, 8, Chid) f32   per-tile SE pool partial sum
        hc, hl, hr,               # VMEM scratch, (TH+2, W, Chid) each, mm_dtype
    ):
        t = pl.program_id(1)
        TH = hdw_ref.shape[1]
        W = hdw_ref.shape[2]
        chid = hdw_ref.shape[3]
        C = x_ref.shape[3]

        # x rows [t*TH, t*TH + TH + 2) of the H-padded image: tile + 1-row halo each side.
        xw = x_ref[0, pl.ds(t * TH, TH + 2), :, :]                      # (TH+2, W, C)

        # ---- 1x1 expand (BN1/BN2 folded) + GELU, including the halo rows ----
        w1 = w1_ref[...]
        xf = xw.reshape((TH + 2) * W, C).astype(w1.dtype)
        h = jnp.dot(xf, w1, preferred_element_type=jnp.float32) + b1_ref[...]
        h = _gelu(h, approx_gelu).reshape(TH + 2, W, chid)
        hc[...] = h.astype(hc.dtype)

        # Depthwise zero-padding lives in *hidden* space: at the image boundary the halo
        # rows (which were computed from the zero-padded x rows) must be zeroed.
        @pl.when(t == 0)
        def _():
            hc[0] = jnp.zeros((W, chid), hc.dtype)

        @pl.when(t == pl.num_programs(1) - 1)
        def _():
            hc[TH + 1] = jnp.zeros((W, chid), hc.dtype)

        # ---- hoisted +/-1 W shifts: build the shifted copies ONCE (XLU), so the 9 taps
        # below are aligned major-axis slices + multiply-add only ----
        v = hc[...]
        zcol = jnp.zeros((TH + 2, 1, chid), hc.dtype)
        hl[...] = jnp.concatenate([zcol, v[:, :W - 1, :]], axis=1)      # input column w-1
        hr[...] = jnp.concatenate([v[:, 1:, :], zcol], axis=1)          # input column w+1

        # ---- depthwise 3x3 (bn3 scale folded into taps), f32 accumulation ----
        acc = jnp.zeros((TH, W, chid), jnp.float32)
        for i in range(3):                                              # kernel row
            acc = acc + hl[i:i + TH, :, :] * wdw_ref[3 * i + 0, :]
            acc = acc + hc[i:i + TH, :, :] * wdw_ref[3 * i + 1, :]
            acc = acc + hr[i:i + TH, :, :] * wdw_ref[3 * i + 2, :]

        hdw = _gelu(acc + bdw_ref[...], approx_gelu)                    # (TH, W, Chid) f32

        # per-tile partial sum for the SE global average pool (f32, pre-cast)
        tile_sum = jnp.sum(hdw.reshape(TH * W, chid), axis=0, keepdims=True)   # (1, Chid)
        psum_ref[0, 0] = jnp.broadcast_to(tile_sum, (8, chid))

        hdw_ref[0] = hdw.astype(hdw_ref.dtype)

    return kernel


# --------------------------------------------------------------------------------------
# pass 2: SE gate (column form) folded into the BN4-folded projection, + identity residual.
# --------------------------------------------------------------------------------------
def _se_project_kernel(
    hdw_ref,                      # (1, TH, W, Chid) store_dtype
    x_ref,                        # (1, H+2, W, Cin) f32  (residual source, resident per n)
    pool_ref,                     # (1, Chid, 1) f32      pooled column for this image
    sw1_ref, sb1_ref,             # (Csq, Chid), (Csq, 1)   SE fc1 (pre-transposed)
    sw2_ref, sb2_ref,             # (Chid, Csq), (Chid, 1)  SE fc2 (pre-transposed)
    w2_ref, b2_ref,               # (Chid, Cout) mm_dtype, (1, Cout) f32   bn4-folded proj
    out_ref,                      # (1, TH, W, Cout) f32
):
    t = pl.program_id(1)
    TH = out_ref.shape[1]
    W = out_ref.shape[2]
    cout = out_ref.shape[3]
    chid = hdw_ref.shape[3]

    # SqueezeExcitation entirely in (Chid,1)/(Csq,1) column form: no in-kernel transpose.
    pooled = pool_ref[0]                                                # (Chid, 1) f32
    s = jnp.dot(sw1_ref[...], pooled, preferred_element_type=jnp.float32) + sb1_ref[...]
    s = jnp.maximum(s, 0.0)
    g = jnp.dot(sw2_ref[...], s, preferred_element_type=jnp.float32) + sb2_ref[...]
    g = jnp.clip(g + 3.0, 0.0, 6.0) * (1.0 / 6.0)                       # hard_sigmoid, (Chid, 1)

    # SE gate folded into the rows of the projection weight (Chid*Cout mults, not H*W*Chid).
    w2 = w2_ref[...]
    w2g = w2 * g.astype(w2.dtype)                                       # (Chid, Cout)

    hf = hdw_ref[0].reshape(TH * W, chid)
    o = jnp.dot(hf, w2g, preferred_element_type=jnp.float32) + b2_ref[...]

    # Identity residual: rows t*TH .. t*TH+TH-1 of the H-padded x.
    res = x_ref[0, pl.ds(t * TH + 1, TH), :, :]
    out_ref[0] = res + o.reshape(TH, W, cout)


# --------------------------------------------------------------------------------------
# wrappers
# --------------------------------------------------------------------------------------
def _pick_tile_h(H, max_tile=16):
    for th in range(min(H, max_tile), 0, -1):
        if H % th == 0 and H // th >= 2:
            return th
    return H


def _vmem_limit_bytes(requested):
    try:
        phys = pltpu.get_tpu_info().vmem_capacity_bytes
    except Exception:
        phys = 128 * 2 ** 20
    if phys <= 64 * 2 ** 20:          # v7x-class: leave headroom below 64 MiB
        cap = 48 * 2 ** 20
    else:                             # v5e / v6e: 128 MiB physical
        cap = 112 * 2 ** 20
    return int(min(cap, max(32 * 2 ** 20, requested)))


def _nbytes(arrs):
    return sum(int(np.prod(a.shape)) * jnp.dtype(a.dtype).itemsize for a in arrs)


def mbconv3x3_pallas_nhwc(x_nhwc, params, *, tile_h=None, precision="bf16",
                          approx_gelu=False):
    """MBConv3x3 forward, NHWC, default config (stride=1, out==in, use_se, drop_path=0).

    precision: "bf16" (recommended on v6e/v7x: bf16 MXU operands + bf16 depthwise
               scratch/taps, f32 accumulation) or "fp32" (use on v5e / for bit accuracy).
    approx_gelu: tanh-approx GELU on the EUP instead of torch's exact erf GELU.
    """
    N, H, W, C = x_nhwc.shape
    chid = params["w1"].shape[1]
    cout = params["w2"].shape[1]
    csq = params["se_w1"].shape[1]
    assert C == cout, "this kernel covers the default config (identity residual)"

    TH = int(tile_h) if tile_h else _pick_tile_h(H)
    assert H % TH == 0
    HT = H // TH

    mm_dtype = jnp.bfloat16 if precision == "bf16" else jnp.float32
    itemsize = jnp.dtype(mm_dtype).itemsize

    # ---- fold the four inference-mode BN affines into the conv weights/biases ----
    # (x*s1+b1) @ w1, then *s2+b2   ->   x @ w1_eff + b1_eff
    w1_eff = ((params["bn1_s"].reshape(C, 1) * params["w1"]) * params["bn2_s"]).astype(mm_dtype)
    b1_eff = (jnp.dot(params["bn1_b"], params["w1"]) * params["bn2_s"]
              + params["bn2_b"]).astype(jnp.float32)
    # depthwise conv, then *s3+b3   ->   taps scaled by s3, single bias add of b3
    wdw_eff = (params["wdw"] * params["bn3_s"]).astype(mm_dtype)
    bdw_eff = params["bn3_b"].astype(jnp.float32)
    # h @ w2 + b2, then *s4+b4      ->   h @ w2_eff + b2_eff
    w2_eff = (params["w2"] * params["bn4_s"]).astype(mm_dtype)
    b2_eff = (params["b2"] * params["bn4_s"] + params["bn4_b"]).astype(jnp.float32)
    # SE weights pre-transposed so the in-kernel SE runs in column form.
    se_w1t = params["se_w1"].T.astype(jnp.float32)                     # (Csq, Chid)
    se_b1c = params["se_b1"].reshape(csq, 1).astype(jnp.float32)
    se_w2t = params["se_w2"].T.astype(jnp.float32)                     # (Chid, Csq)
    se_b2c = params["se_b2"].reshape(chid, 1).astype(jnp.float32)

    # 1-row zero pad along H only (the true depthwise zero padding is applied in hidden
    # space inside pass 1; the padded rows here just keep every tile's DMA in bounds).
    x_pad = jnp.pad(x_nhwc, ((0, 0), (1, 1), (0, 0), (0, 0)))

    def const_spec(arr):
        nd = arr.ndim
        return pl.BlockSpec(arr.shape, lambda n, t, _nd=nd: (0,) * _nd)

    # ---------------- pass 1: expand + GELU + depthwise + GELU + pool partials ----------------
    a_params = [w1_eff, b1_eff, wdw_eff, bdw_eff]
    a_work = (2 * (H + 2) * W * C * 4                 # resident padded x (double buffered)
              + 2 * TH * W * chid * itemsize          # h_dw output blocks
              + 2 * 8 * chid * 4                      # pooled partial-sum blocks
              + 3 * (TH + 2) * W * chid * itemsize    # hc/hl/hr scratch
              + 8 * (TH + 2) * W * chid * 4           # f32 temporaries (h, acc, concat, GELU)
              + 2 * _nbytes(a_params))
    a_vmem = _vmem_limit_bytes(int(1.5 * a_work))

    h_dw, partials = pl.pallas_call(
        _make_expand_dw_kernel(approx_gelu),
        out_shape=(jax.ShapeDtypeStruct((N, H, W, chid), mm_dtype),
                   jax.ShapeDtypeStruct((N, HT, 8, chid), jnp.float32)),
        grid=(N, HT),
        in_specs=[pl.BlockSpec((1, H + 2, W, C), lambda n, t: (n, 0, 0, 0))]
                 + [const_spec(a) for a in a_params],
        out_specs=(pl.BlockSpec((1, TH, W, chid), lambda n, t: (n, t, 0, 0)),
                   pl.BlockSpec((1, 1, 8, chid), lambda n, t: (n, t, 0, 0))),
        scratch_shapes=[pltpu.VMEM((TH + 2, W, chid), mm_dtype)] * 3,
        compiler_params=pltpu.CompilerParams(
            dimension_semantics=("parallel", "parallel"),
            vmem_limit_bytes=a_vmem),
    )(x_pad, *a_params)

    # ---- two-pass SE pooling: reduce the per-tile partial sums (tiny (N, Chid) op) ----
    pooled = partials[:, :, 0, :].sum(axis=1) * (1.0 / (H * W))        # (N, Chid)
    pooled_col = pooled.reshape(N, chid, 1).astype(jnp.float32)

    # ---------------- pass 2: SE gate + 1x1 projection + identity residual ----------------
    b_params = [se_w1t, se_b1c, se_w2t, se_b2c, w2_eff, b2_eff]
    b_work = (2 * TH * W * chid * itemsize            # h_dw input blocks
              + 2 * (H + 2) * W * C * 4               # resident padded x
              + 2 * chid * 4                          # pooled column
              + 2 * TH * W * cout * 4                 # output blocks
              + 6 * TH * W * chid * 4                 # f32 temporaries
              + 2 * chid * cout * 4                   # gated projection weight
              + 2 * _nbytes(b_params))
    b_vmem = _vmem_limit_bytes(int(1.5 * b_work))

    out = pl.pallas_call(
        _se_project_kernel,
        out_shape=jax.ShapeDtypeStruct((N, H, W, cout), jnp.float32),
        grid=(N, HT),
        in_specs=[pl.BlockSpec((1, TH, W, chid), lambda n, t: (n, t, 0, 0)),
                  pl.BlockSpec((1, H + 2, W, C), lambda n, t: (n, 0, 0, 0)),
                  pl.BlockSpec((1, chid, 1), lambda n, t: (n, 0, 0))]
                 + [const_spec(a) for a in b_params],
        # NOTE: at the C=4 benchmark size the Cout lane dim masks 124/128 lanes on every
        # store; real MetaNet configs (C >= 128) are lane-dense.
        out_specs=pl.BlockSpec((1, TH, W, cout), lambda n, t: (n, t, 0, 0)),
        compiler_params=pltpu.CompilerParams(
            dimension_semantics=("parallel", "parallel"),
            vmem_limit_bytes=b_vmem),
    )(h_dw, x_pad, pooled_col, *b_params)

    return out


def mbconv3x3_pallas(x_nchw, params, **kwargs):
    """NCHW wrapper for parity with the torch module.

    NOTE: the NCHW<->NHWC transposes here are separate full HBM passes; in a real network
    keep activations NHWC across layers and call mbconv3x3_pallas_nhwc directly.
    """
    x_nhwc = jnp.transpose(x_nchw, (0, 2, 3, 1))
    out = mbconv3x3_pallas_nhwc(x_nhwc, params, **kwargs)
    return jnp.transpose(out, (0, 3, 1, 2))


# --------------------------------------------------------------------------------------
# pure-JAX reference (unfolded, f32, exact GELU) for verification
# --------------------------------------------------------------------------------------
def mbconv3x3_reference(x_nchw, params):
    x = jnp.transpose(x_nchw, (0, 2, 3, 1))
    N, H, W, C = x.shape
    residual = x

    h = x * params["bn1_s"] + params["bn1_b"]
    h = jnp.einsum("nhwc,cd->nhwd", h, params["w1"])
    h = h * params["bn2_s"] + params["bn2_b"]
    h = _gelu(h, approx=False)

    hp = jnp.pad(h, ((0, 0), (1, 1), (1, 1), (0, 0)))
    acc = jnp.zeros_like(h)
    for i in range(3):
        for j in range(3):
            acc = acc + hp[:, i:i + H, j:j + W, :] * params["wdw"][i * 3 + j]
    h = acc * params["bn3_s"] + params["bn3_b"]
    h = _gelu(h, approx=False)

    pooled = jnp.mean(h, axis=(1, 2))                                  # (N, Chid)
    s = jnp.maximum(pooled @ params["se_w1"] + params["se_b1"], 0.0)
    s = s @ params["se_w2"] + params["se_b2"]
    s = jnp.clip(s + 3.0, 0.0, 6.0) / 6.0
    h = h * s[:, None, None, :]

    o = jnp.einsum("nhwc,cd->nhwd", h, params["w2"]) + params["b2"]
    o = o * params["bn4_s"] + params["bn4_b"]
    out = residual + o
    return jnp.transpose(out, (0, 3, 1, 2))


def make_params(key, in_features, mlp_ratio=4):
    """Deterministic synthetic parameters (no checkpoint). BN given as scale/bias.

    NOTE: the PyTorch __init__ zero-inits the final BN weight; here we use random
    (nonzero) values so the kernel path is exercised non-trivially.
    """
    hidden = int(in_features * mlp_ratio)
    out_features = in_features
    squeeze = _make_divisible(hidden // 4, 8)

    keys = jax.random.split(key, 16)
    n = lambda k, shape, scale=0.1: (scale * jax.random.normal(k, shape)).astype(jnp.float32)

    return {
        "bn1_s": 1.0 + n(keys[0], (1, in_features)),
        "bn1_b": n(keys[1], (1, in_features)),
        "w1":    n(keys[2], (in_features, hidden), 0.3),
        "bn2_s": 1.0 + n(keys[3], (1, hidden)),
        "bn2_b": n(keys[4], (1, hidden)),
        "wdw":   n(keys[5], (9, hidden), 0.3),
        "bn3_s": 1.0 + n(keys[6], (1, hidden)),
        "bn3_b": n(keys[7], (1, hidden)),
        "se_w1": n(keys[8], (hidden, squeeze), 0.3),
        "se_b1": n(keys[9], (1, squeeze)),
        "se_w2": n(keys[10], (squeeze, hidden), 0.3),
        "se_b2": n(keys[11], (1, hidden)),
        "w2":    n(keys[12], (hidden, out_features), 0.3),
        "b2":    n(keys[13], (1, out_features)),
        "bn4_s": 1.0 + n(keys[14], (1, out_features)),
        "bn4_b": n(keys[15], (1, out_features)),
    }


if __name__ == "__main__":
    key = jax.random.PRNGKey(0)
    k_x, k_p = jax.random.split(key)

    N, C, H, W = 2, 4, 16, 16          # in_features=4, mlp_ratio=4 -> hidden=16, squeeze=8
    x = jax.random.normal(k_x, (N, C, H, W), dtype=jnp.float32)
    params = make_params(k_p, in_features=C, mlp_ratio=4)

    ref = jax.block_until_ready(mbconv3x3_reference(x, params))

    # accurate path (f32 everywhere, exact erf GELU): tight check against the reference
    out = mbconv3x3_pallas(x, params, precision="fp32", approx_gelu=False)
    out = jax.block_until_ready(out)
    assert out.shape == (N, C, H, W)
    np.testing.assert_allclose(np.asarray(out), np.asarray(ref), rtol=1e-3, atol=1e-3)

    # fast path (bf16 MXU operands + bf16 depthwise scratch, tanh GELU): loose check,
    # this is an explicitly reduced-precision mode for v6e/v7x.
    out_fast = mbconv3x3_pallas(x, params, precision="bf16", approx_gelu=True)
    out_fast = jax.block_until_ready(out_fast)
    np.testing.assert_allclose(np.asarray(out_fast), np.asarray(ref), rtol=7.5e-2, atol=7.5e-2)

    print("KERNEL_OK")
</pallas_src>

<mosaic_0001>
module attributes {stable_mosaic.version = 11 : i64} {
  func.func @kernel(%arg0: i32, %arg1: i32, %arg2: memref<1x18x16x4xf32, #tpu.memory_space<vmem>>, %arg3: memref<4x16xf32, #tpu.memory_space<vmem>>, %arg4: memref<1x16xf32, #tpu.memory_space<vmem>>, %arg5: memref<9x16xf32, #tpu.memory_space<vmem>>, %arg6: memref<1x16xf32, #tpu.memory_space<vmem>>, %arg7: memref<1x8x16x16xf32, #tpu.memory_space<vmem>>, %arg8: memref<1x1x8x16xf32, #tpu.memory_space<vmem>>, %arg9: memref<10x16x16xf32, #tpu.memory_space<vmem>>, %arg10: memref<10x16x16xf32, #tpu.memory_space<vmem>>, %arg11: memref<10x16x16xf32, #tpu.memory_space<vmem>>) attributes {dimension_semantics = [#tpu.dimension_semantics<parallel>, #tpu.dimension_semantics<parallel>], iteration_bounds = array<i64: 2, 2>, scalar_prefetch = 0 : i64, scratch_operands = 3 : i64, tpu.core_type = #tpu.core_type<tc>, window_params = [{transform_indices = @transform_0, window_bounds = array<i64: 1, 18, 16, 4>}, {pipeline_mode = #tpu.pipeline_mode<synchronous>, transform_indices = @transform_1, window_bounds = array<i64: 4, 16>}, {pipeline_mode = #tpu.pipeline_mode<synchronous>, transform_indices = @transform_2, window_bounds = array<i64: 1, 16>}, {pipeline_mode = #tpu.pipeline_mode<synchronous>, transform_indices = @transform_3, window_bounds = array<i64: 9, 16>}, {pipeline_mode = #tpu.pipeline_mode<synchronous>, transform_indices = @transform_4, window_bounds = array<i64: 1, 16>}, {transform_indices = @transform_5, window_bounds = array<i64: 1, 8, 16, 16>}, {transform_indices = @transform_6, window_bounds = array<i64: 1, 1, 8, 16>}]} {
    %c8_i32 = arith.constant 8 : i32
    %0 = arith.muli %arg1, %c8_i32 : i32
    %c0 = arith.constant 0 : index
    %1 = arith.index_cast %0 : i32 to index
    %c0_0 = arith.constant 0 : index
    %c0_1 = arith.constant 0 : index
    %2 = vector.load %arg2[%c0, %1, %c0_0, %c0_1] : memref<1x18x16x4xf32, #tpu.memory_space<vmem>>, vector<1x10x16x4xf32>
    %3 = vector.shape_cast %2 : vector<1x10x16x4xf32> to vector<10x16x4xf32>
    %c0_2 = arith.constant 0 : index
    %c0_3 = arith.constant 0 : index
    %4 = vector.load %arg3[%c0_2, %c0_3] : memref<4x16xf32, #tpu.memory_space<vmem>>, vector<4x16xf32>
    %5 = vector.shape_cast %3 : vector<10x16x4xf32> to vector<160x4xf32>
    %cst = arith.constant dense<0.000000e+00> : vector<160x16xf32>
    %6 = tpu.matmul %5, %4, %cst {dimension_numbers = #tpu.dot_dimension_numbers<[1], [0], [0], [1], [0, 0, 1, 1], [], []>} : vector<160x4xf32>, vector<4x16xf32>, vector<160x16xf32> -> vector<160x16xf32>
    %c0_4 = arith.constant 0 : index
    %c0_5 = arith.constant 0 : index
    %7 = vector.load %arg4[%c0_4, %c0_5] : memref<1x16xf32, #tpu.memory_space<vmem>>, vector<1x16xf32>
    %8 = vector.broadcast %7 : vector<1x16xf32> to vector<160x16xf32>
    %9 = arith.addf %6, %8 : vector<160x16xf32>
    %cst_6 = arith.constant 5.000000e-01 : f32
    %10 = vector.broadcast %cst_6 : f32 to vector<160x16xf32>
    %11 = arith.mulf %10, %9 : vector<160x16xf32>
    %cst_7 = arith.constant 0.707106769 : f32
    %12 = vector.broadcast %cst_7 : f32 to vector<160x16xf32>
    %13 = arith.mulf %9, %12 : vector<160x16xf32>
    %14 = math.erf %13 : vector<160x16xf32>
    %cst_8 = arith.constant 1.000000e+00 : f32
    %15 = vector.broadcast %cst_8 : f32 to vector<160x16xf32>
    %16 = arith.addf %15, %14 : vector<160x16xf32>
    %17 = arith.mulf %11, %16 : vector<160x16xf32>
    %18 = vector.shape_cast %17 : vector<160x16xf32> to vector<10x16x16xf32>
    %c0_9 = arith.constant 0 : index
    %c0_10 = arith.constant 0 : index
    %c0_11 = arith.constant 0 : index
    %19 = vector.load %arg9[%c0_9, %c0_10, %c0_11] : memref<10x16x16xf32, #tpu.memory_space<vmem>>, vector<10x16x16xf32>
    tpu.vector_store %arg9[%c0_9, %c0_10, %c0_11], %18 {strides = array<i32>} : memref<10x16x16xf32, #tpu.memory_space<vmem>>, vector<10x16x16xf32>,
    %c0_i32 = arith.constant 0 : i32
    %20 = arith.cmpi eq, %arg1, %c0_i32 : i32
    %21 = arith.extui %20 : i1 to i32
    %c0_i32_12 = arith.constant 0 : i32
    %22 = arith.cmpi ne, %21, %c0_i32_12 : i32
    scf.if %22 {
      %cst_76 = arith.constant 0.000000e+00 : f32
      %121 = vector.broadcast %cst_76 : f32 to vector<16x16xf32>
      %c0_77 = arith.constant 0 : index
      %c0_78 = arith.constant 0 : index
      %c0_79 = arith.constant 0 : index
      %122 = vector.load %arg9[%c0_77, %c0_78, %c0_79] : memref<10x16x16xf32, #tpu.memory_space<vmem>>, vector<1x16x16xf32>
      %123 = vector.shape_cast %122 : vector<1x16x16xf32> to vector<16x16xf32>
      %124 = vector.shape_cast %121 : vector<16x16xf32> to vector<1x16x16xf32>
      tpu.vector_store %arg9[%c0_77, %c0_78, %c0_79], %124 {strides = array<i32>} : memref<10x16x16xf32, #tpu.memory_space<vmem>>, vector<1x16x16xf32>,
    } else {
    }
    %c1_i32 = arith.constant 1 : i32
    %23 = arith.cmpi eq, %arg1, %c1_i32 : i32
    %24 = arith.extui %23 : i1 to i32
    %c0_i32_13 = arith.constant 0 : i32
    %25 = arith.cmpi ne, %24, %c0_i32_13 : i32
    scf.if %25 {
      %cst_76 = arith.constant 0.000000e+00 : f32
      %121 = vector.broadcast %cst_76 : f32 to vector<16x16xf32>
      %c9 = arith.constant 9 : index
      %c0_77 = arith.constant 0 : index
      %c0_78 = arith.constant 0 : index
      %122 = vector.load %arg9[%c9, %c0_77, %c0_78] : memref<10x16x16xf32, #tpu.memory_space<vmem>>, vector<1x16x16xf32>
      %123 = vector.shape_cast %122 : vector<1x16x16xf32> to vector<16x16xf32>
      %124 = vector.shape_cast %121 : vector<16x16xf32> to vector<1x16x16xf32>
      tpu.vector_store %arg9[%c9, %c0_77, %c0_78], %124 {strides = array<i32>} : memref<10x16x16xf32, #tpu.memory_space<vmem>>, vector<1x16x16xf32>,
    } else {
    }
    %c0_14 = arith.constant 0 : index
    %c0_15 = arith.constant 0 : index
    %c0_16 = arith.constant 0 : index
    %26 = vector.load %arg9[%c0_14, %c0_15, %c0_16] : memref<10x16x16xf32, #tpu.memory_space<vmem>>, vector<10x16x16xf32>
    %cst_17 = arith.constant 0.000000e+00 : f32
    %27 = vector.broadcast %cst_17 : f32 to vector<10x1x16xf32>
    %28 = vector.extract_strided_slice %26 {offsets = [0, 0, 0], sizes = [10, 15, 16], strides = [1, 1, 1]} : vector<10x16x16xf32> to vector<10x15x16xf32>
    %29 = tpu.concatenate %27, %28 in 1 : vector<10x1x16xf32>, vector<10x15x16xf32> -> vector<10x16x16xf32>
    %c0_18 = arith.constant 0 : index
    %c0_19 = arith.constant 0 : index
    %c0_20 = arith.constant 0 : index
    %30 = vector.load %arg10[%c0_18, %c0_19, %c0_20] : memref<10x16x16xf32, #tpu.memory_space<vmem>>, vector<10x16x16xf32>
    tpu.vector_store %arg10[%c0_18, %c0_19, %c0_20], %29 {strides = array<i32>} : memref<10x16x16xf32, #tpu.memory_space<vmem>>, vector<10x16x16xf32>,
    %31 = vector.extract_strided_slice %26 {offsets = [0, 1, 0], sizes = [10, 15, 16], strides = [1, 1, 1]} : vector<10x16x16xf32> to vector<10x15x16xf32>
    %32 = tpu.concatenate %31, %27 in 1 : vector<10x15x16xf32>, vector<10x1x16xf32> -> vector<10x16x16xf32>
    %c0_21 = arith.constant 0 : index
    %c0_22 = arith.constant 0 : index
    %c0_23 = arith.constant 0 : index
    %33 = vector.load %arg11[%c0_21, %c0_22, %c0_23] : memref<10x16x16xf32, #tpu.memory_space<vmem>>, vector<10x16x16xf32>
    tpu.vector_store %arg11[%c0_21, %c0_22, %c0_23], %32 {strides = array<i32>} : memref<10x16x16xf32, #tpu.memory_space<vmem>>, vector<10x16x16xf32>,
    %cst_24 = arith.constant 0.000000e+00 : f32
    %34 = vector.broadcast %cst_24 : f32 to vector<8x16x16xf32>
    %c0_25 = arith.constant 0 : index
    %c0_26 = arith.constant 0 : index
    %c0_27 = arith.constant 0 : index
    %35 = vector.load %arg10[%c0_25, %c0_26, %c0_27] : memref<10x16x16xf32, #tpu.memory_space<vmem>>, vector<8x16x16xf32>
    %c0_28 = arith.constant 0 : index
    %c0_29 = arith.constant 0 : index
    %36 = vector.load %arg5[%c0_28, %c0_29] : memref<9x16xf32, #tpu.memory_space<vmem>>, vector<1x16xf32>
    %37 = vector.shape_cast %36 : vector<1x16xf32> to vector<16xf32>
    %38 = vector.shape_cast %37 : vector<16xf32> to vector<1x1x16xf32>
    %39 = vector.broadcast %38 : vector<1x1x16xf32> to vector<8x16x16xf32>
    %40 = arith.mulf %35, %39 : vector<8x16x16xf32>
    %41 = arith.addf %34, %40 : vector<8x16x16xf32>
    %c0_30 = arith.constant 0 : index
    %c0_31 = arith.constant 0 : index
    %c0_32 = arith.constant 0 : index
    %42 = vector.load %arg9[%c0_30, %c0_31, %c0_32] : memref<10x16x16xf32, #tpu.memory_space<vmem>>, vector<8x16x16xf32>
    %c1 = arith.constant 1 : index
    %c0_33 = arith.constant 0 : index
    %43 = vector.load %arg5[%c1, %c0_33] : memref<9x16xf32, #tpu.memory_space<vmem>>, vector<1x16xf32>
    %44 = vector.shape_cast %43 : vector<1x16xf32> to vector<16xf32>
    %45 = vector.shape_cast %44 : vector<16xf32> to vector<1x1x16xf32>
    %46 = vector.broadcast %45 : vector<1x1x16xf32> to vector<8x16x16xf32>
    %47 = arith.mulf %42, %46 : vector<8x16x16xf32>
    %48 = arith.addf %41, %47 : vector<8x16x16xf32>
    %c0_34 = arith.constant 0 : index
    %c0_35 = arith.constant 0 : index
    %c0_36 = arith.constant 0 : index
    %49 = vector.load %arg11[%c0_34, %c0_35, %c0_36] : memref<10x16x16xf32, #tpu.memory_space<vmem>>, vector<8x16x16xf32>
    %c2 = arith.constant 2 : index
    %c0_37 = arith.constant 0 : index
    %50 = vector.load %arg5[%c2, %c0_37] : memref<9x16xf32, #tpu.memory_space<vmem>>, vector<1x16xf32>
    %51 = vector.shape_cast %50 : vector<1x16xf32> to vector<16xf32>
    %52 = vector.shape_cast %51 : vector<16xf32> to vector<1x1x16xf32>
    %53 = vector.broadcast %52 : vector<1x1x16xf32> to vector<8x16x16xf32>
    %54 = arith.mulf %49, %53 : vector<8x16x16xf32>
    %55 = arith.addf %48, %54 : vector<8x16x16xf32>
    %c1_38 = arith.constant 1 : index
    %c0_39 = arith.constant 0 : index
    %c0_40 = arith.constant 0 : index
    %56 = vector.load %arg10[%c1_38, %c0_39, %c0_40] : memref<10x16x16xf32, #tpu.memory_space<vmem>>, vector<8x16x16xf32>
    %c3 = arith.constant 3 : index
    %c0_41 = arith.constant 0 : index
    %57 = vector.load %arg5[%c3, %c0_41] : memref<9x16xf32, #tpu.memory_space<vmem>>, vector<1x16xf32>
    %58 = vector.shape_cast %57 : vector<1x16xf32> to vector<16xf32>
    %59 = vector.shape_cast %58 : vector<16xf32> to vector<1x1x16xf32>
    %60 = vector.broadcast %59 : vector<1x1x16xf32> to vector<8x16x16xf32>
    %61 = arith.mulf %56, %60 : vector<8x16x16xf32>
    %62 = arith.addf %55, %61 : vector<8x16x16xf32>
    %c1_42 = arith.constant 1 : index
    %c0_43 = arith.constant 0 : index
    %c0_44 = arith.constant 0 : index
    %63 = vector.load %arg9[%c1_42, %c0_43, %c0_44] : memref<10x16x16xf32, #tpu.memory_space<vmem>>, vector<8x16x16xf32>
    %c4 = arith.constant 4 : index
    %c0_45 = arith.constant 0 : index
    %64 = vector.load %arg5[%c4, %c0_45] : memref<9x16xf32, #tpu.memory_space<vmem>>, vector<1x16xf32>
    %65 = vector.shape_cast %64 : vector<1x16xf32> to vector<16xf32>
    %66 = vector.shape_cast %65 : vector<16xf32> to vector<1x1x16xf32>
    %67 = vector.broadcast %66 : vector<1x1x16xf32> to vector<8x16x16xf32>
    %68 = arith.mulf %63, %67 : vector<8x16x16xf32>
    %69 = arith.addf %62, %68 : vector<8x16x16xf32>
    %c1_46 = arith.constant 1 : index
    %c0_47 = arith.constant 0 : index
    %c0_48 = arith.constant 0 : index
    %70 = vector.load %arg11[%c1_46, %c0_47, %c0_48] : memref<10x16x16xf32, #tpu.memory_space<vmem>>, vector<8x16x16xf32>
    %c5 = arith.constant 5 : index
    %c0_49 = arith.constant 0 : index
    %71 = vector.load %arg5[%c5, %c0_49] : memref<9x16xf32, #tpu.memory_space<vmem>>, vector<1x16xf32>
    %72 = vector.shape_cast %71 : vector<1x16xf32> to vector<16xf32>
    %73 = vector.shape_cast %72 : vector<16xf32> to vector<1x1x16xf32>
    %74 = vector.broadcast %73 : vector<1x1x16xf32> to vector<8x16x16xf32>
    %75 = arith.mulf %70, %74 : vector<8x16x16xf32>
    %76 = arith.addf %69, %75 : vector<8x16x16xf32>
    %c2_50 = arith.constant 2 : index
    %c0_51 = arith.constant 0 : index
    %c0_52 = arith.constant 0 : index
    %77 = vector.load %arg10[%c2_50, %c0_51, %c0_52] : memref<10x16x16xf32, #tpu.memory_space<vmem>>, vector<8x16x16xf32>
    %c6 = arith.constant 6 : index
    %c0_53 = arith.constant 0 : index
    %78 = vector.load %arg5[%c6, %c0_53] : memref<9x16xf32, #tpu.memory_space<vmem>>, vector<1x16xf32>
    %79 = vector.shape_cast %78 : vector<1x16xf32> to vector<16xf32>
    %80 = vector.shape_cast %79 : vector<16xf32> to vector<1x1x16xf32>
    %81 = vector.broadcast %80 : vector<1x1x16xf32> to vector<8x16x16xf32>
    %82 = arith.mulf %77, %81 : vector<8x16x16xf32>
    %83 = arith.addf %76, %82 : vector<8x16x16xf32>
    %c2_54 = arith.constant 2 : index
    %c0_55 = arith.constant 0 : index
    %c0_56 = arith.constant 0 : index
    %84 = vector.load %arg9[%c2_54, %c0_55, %c0_56] : memref<10x16x16xf32, #tpu.memory_space<vmem>>, vector<8x16x16xf32>
    %c7 = arith.constant 7 : index
    %c0_57 = arith.constant 0 : index
    %85 = vector.load %arg5[%c7, %c0_57] : memref<9x16xf32, #tpu.memory_space<vmem>>, vector<1x16xf32>
    %86 = vector.shape_cast %85 : vector<1x16xf32> to vector<16xf32>
    %87 = vector.shape_cast %86 : vector<16xf32> to vector<1x1x16xf32>
    %88 = vector.broadcast %87 : vector<1x1x16xf32> to vector<8x16x16xf32>
    %89 = arith.mulf %84, %88 : vector<8x16x16xf32>
    %90 = arith.addf %83, %89 : vector<8x16x16xf32>
    %c2_58 = arith.constant 2 : index
    %c0_59 = arith.constant 0 : index
    %c0_60 = arith.constant 0 : index
    %91 = vector.load %arg11[%c2_58, %c0_59, %c0_60] : memref<10x16x16xf32, #tpu.memory_space<vmem>>, vector<8x16x16xf32>
    %c8 = arith.constant 8 : index
    %c0_61 = arith.constant 0 : index
    %92 = vector.load %arg5[%c8, %c0_61] : memref<9x16xf32, #tpu.memory_space<vmem>>, vector<1x16xf32>
    %93 = vector.shape_cast %92 : vector<1x16xf32> to vector<16xf32>
    %94 = vector.shape_cast %93 : vector<16xf32> to vector<1x1x16xf32>
    %95 = vector.broadcast %94 : vector<1x1x16xf32> to vector<8x16x16xf32>
    %96 = arith.mulf %91, %95 : vector<8x16x16xf32>
    %97 = arith.addf %90, %96 : vector<8x16x16xf32>
    %c0_62 = arith.constant 0 : index
    %c0_63 = arith.constant 0 : index
    %98 = vector.load %arg6[%c0_62, %c0_63] : memref<1x16xf32, #tpu.memory_space<vmem>>, vector<1x16xf32>
    %99 = vector.shape_cast %98 : vector<1x16xf32> to vector<1x1x16xf32>
    %100 = vector.broadcast %99 : vector<1x1x16xf32> to vector<8x16x16xf32>
    %101 = arith.addf %97, %100 : vector<8x16x16xf32>
    %cst_64 = arith.constant 5.000000e-01 : f32
    %102 = vector.broadcast %cst_64 : f32 to vector<8x16x16xf32>
    %103 = arith.mulf %102, %101 : vector<8x16x16xf32>
    %cst_65 = arith.constant 0.707106769 : f32
    %104 = vector.broadcast %cst_65 : f32 to vector<8x16x16xf32>
    %105 = arith.mulf %101, %104 : vector<8x16x16xf32>
    %106 = math.erf %105 : vector<8x16x16xf32>
    %cst_66 = arith.constant 1.000000e+00 : f32
    %107 = vector.broadcast %cst_66 : f32 to vector<8x16x16xf32>
    %108 = arith.addf %107, %106 : vector<8x16x16xf32>
    %109 = arith.mulf %103, %108 : vector<8x16x16xf32>
    %110 = vector.shape_cast %109 : vector<8x16x16xf32> to vector<128x16xf32>
    %cst_67 = arith.constant dense<0.000000e+00> : vector<16xf32>
    %111 = vector.multi_reduction <add>, %110, %cst_67 [0] : vector<128x16xf32> to vector<16xf32>
    %112 = vector.shape_cast %111 : vector<16xf32> to vector<1x16xf32>
    %113 = vector.shape_cast %112 : vector<1x16xf32> to vector<1x16xf32>
    %114 = vector.broadcast %113 : vector<1x16xf32> to vector<8x16xf32>
    %c0_68 = arith.constant 0 : index
    %c0_69 = arith.constant 0 : index
    %c0_70 = arith.constant 0 : index
    %c0_71 = arith.constant 0 : index
    %115 = vector.load %arg8[%c0_68, %c0_69, %c0_70, %c0_71] : memref<1x1x8x16xf32, #tpu.memory_space<vmem>>, vector<1x1x8x16xf32>
    %116 = vector.shape_cast %115 : vector<1x1x8x16xf32> to vector<8x16xf32>
    %117 = vector.shape_cast %114 : vector<8x16xf32> to vector<1x1x8x16xf32>
    tpu.vector_store %arg8[%c0_68, %c0_69, %c0_70, %c0_71], %117 {strides = array<i32>} : memref<1x1x8x16xf32, #tpu.memory_space<vmem>>, vector<1x1x8x16xf32>,
    %c0_72 = arith.constant 0 : index
    %c0_73 = arith.constant 0 : index
    %c0_74 = arith.constant 0 : index
    %c0_75 = arith.constant 0 : index
    %118 = vector.load %arg7[%c0_72, %c0_73, %c0_74, %c0_75] : memref<1x8x16x16xf32, #tpu.memory_space<vmem>>, vector<1x8x16x16xf32>
    %119 = vector.shape_cast %118 : vector<1x8x16x16xf32> to vector<8x16x16xf32>
    %120 = vector.shape_cast %109 : vector<8x16x16xf32> to vector<1x8x16x16xf32>
    tpu.vector_store %arg7[%c0_72, %c0_73, %c0_74, %c0_75], %120 {strides = array<i32>} : memref<1x8x16x16xf32, #tpu.memory_space<vmem>>, vector<1x8x16x16xf32>,
    return
  }
  func.func @transform_0(%arg0: i32, %arg1: i32) -> (i32, i32, i32, i32) {
    %c0_i32 = arith.constant 0 : i32
    %c0_i32_0 = arith.constant 0 : i32
    %c0_i32_1 = arith.constant 0 : i32
    %c0_i32_2 = arith.constant 0 : i32
    return %arg0, %c0_i32, %c0_i32_0, %c0_i32_1 : i32, i32, i32, i32
  }
  func.func @transform_1(%arg0: i32, %arg1: i32) -> (i32, i32) {
    %c0_i32 = arith.constant 0 : i32
    %c0_i32_0 = arith.constant 0 : i32
    %c0_i32_1 = arith.constant 0 : i32
    return %c0_i32, %c0_i32_0 : i32, i32
  }
  func.func @transform_2(%arg0: i32, %arg1: i32) -> (i32, i32) {
    %c0_i32 = arith.constant 0 : i32
    %c0_i32_0 = arith.constant 0 : i32
    %c0_i32_1 = arith.constant 0 : i32
    return %c0_i32, %c0_i32_0 : i32, i32
  }
  func.func @transform_3(%arg0: i32, %arg1: i32) -> (i32, i32) {
    %c0_i32 = arith.constant 0 : i32
    %c0_i32_0 = arith.constant 0 : i32
    %c0_i32_1 = arith.constant 0 : i32
    return %c0_i32, %c0_i32_0 : i32, i32
  }
  func.func @transform_4(%arg0: i32, %arg1: i32) -> (i32, i32) {
    %c0_i32 = arith.constant 0 : i32
    %c0_i32_0 = arith.constant 0 : i32
    %c0_i32_1 = arith.constant 0 : i32
    return %c0_i32, %c0_i32_0 : i32, i32
  }
  func.func @transform_5(%arg0: i32, %arg1: i32) -> (i32, i32, i32, i32) {
    %c0_i32 = arith.constant 0 : i32
    %c0_i32_0 = arith.constant 0 : i32
    %c0_i32_1 = arith.constant 0 : i32
    return %arg0, %arg1, %c0_i32, %c0_i32_0 : i32, i32, i32, i32
  }
  func.func @transform_6(%arg0: i32, %arg1: i32) -> (i32, i32, i32, i32) {
    %c0_i32 = arith.constant 0 : i32
    %c0_i32_0 = arith.constant 0 : i32
    %c0_i32_1 = arith.constant 0 : i32
    return %arg0, %arg1, %c0_i32, %c0_i32_0 : i32, i32, i32, i32
  }
}

</mosaic_0001>

<llo_original>
// kernel: tpu_custom_call.1
$region0: #{tpu_custom_call.1}
  #allocation0 [shape = 'u32[]', space=smem, size = 0x4, offset = 0x4, fixed_abs, tag = 'smem constant byte address 0x4 - core index']
  #allocation1 [shape = 'u32[144,128]{1,0:T(1,128)}', space=vmem, size = 0x12000, scoped, tag = 'internal scratch']
  #allocation2 [shape = 'f32[10,16,16]{2,1,0:T(8,128)}', space=vmem, size = 0x14000, scoped, tag = 'scratch operand']
  #allocation3 [shape = 'f32[10,16,16]{2,1,0:T(8,128)}', space=vmem, size = 0x14000, scoped, tag = 'scratch operand']
  #allocation4 [shape = 'f32[10,16,16]{2,1,0:T(8,128)}', space=vmem, size = 0x14000, scoped, tag = 'scratch operand']
  %s0 = inlined_call_operand.vmem [shape: f32[2,18,16,4], index: 0, kind: input, shape index: {}]
  %s1 = inlined_call_operand.vmem [shape: f32[4,16], index: 1, kind: input, shape index: {}]
  %s2 = inlined_call_operand.vmem [shape: f32[1,16], index: 2, kind: input, shape index: {}]
  %s3 = inlined_call_operand.vmem [shape: f32[9,16], index: 3, kind: input, shape index: {}]
  %s4 = inlined_call_operand.vmem [shape: f32[1,16], index: 4, kind: input, shape index: {}]
  %s5 = inlined_call_operand.hbm [shape: f32[2,16,16,16], index: 5, kind: output, shape index: {0}]
  %s6 = inlined_call_operand.hbm [shape: f32[2,2,8,16], index: 6, kind: output, shape index: {1}]
  %7 = xla_tuple %s5, %s6
  %s8 = sld [smem:[#allocation0]]
  $region69: #{tpu_custom_call.1} parent=0
    _
  %s10 = ssub.s32 1, %s8
  %s11 = scalar_select 0, %s10, %s8
  $region1: #{tpu_custom_call.1} parent=0
    #allocation5 [shape = 'u8[131072]{0}', space=vmem, size = 0x20000, scoped, tag = 'output window, operand 0']
    #allocation6 [shape = 's32[2]{0}', space=sflag, size = 0x8, scoped, tag = 'scoped memory for tpu_custom_call.1']
    #allocation7 [shape = 'u8[8192]{0}', space=vmem, size = 0x2000, scoped, tag = 'output window, operand 1']
    #allocation8 [shape = 's32[2]{0}', space=sflag, size = 0x8, scoped, tag = 'scoped memory for tpu_custom_call.1']
    %12 = vsyncpa [#allocation6], 0
    %s13 = scalar_lea.sflag [#allocation6], 1
    %14 = vsyncpa %s13, 0
    %15 = vsyncpa [#allocation8], 0
    %s16 = scalar_lea.sflag [#allocation8], 1
    %17 = vsyncpa %s16, 0
    loop: start=0, step=1, limit=6
    $region2: #{tpu_custom_call.1} parent=1 // loop_pre_header
      _
    $region3: #{tpu_custom_call.1} parent=1 // loop_header
      %s19 = sphi 0, %s23
      %p20 = scmp.ge.s32.totalorder %s19, 6
      %s26 = sphi 0, %s38
      %s27 = sphi 0, %s34
      %s28 = sphi 0, %s26
      %s29 = sphi 0, %s27
      %s30 = sphi 0, %s28
      %s31 = sphi 0, %s29
      %s41 = sphi 0, %s43
      %s44 = sphi 0, %s41
      %s45 = sphi 0, %s44
      %s61 = sphi 0, %s45
      %s65 = sphi 0, %s65
      %s67 = sphi 0, %s65
      %s68 = sphi 0, %s67
      %s82 = sphi 0, %s68
      %s86 = sphi 0, %s86
      %s88 = sphi 0, %s86
      %s89 = sphi 0, %s88
      %s103 = sphi 0, %s89
      %s107 = sphi 0, %s107
      %s109 = sphi 0, %s107
      %s110 = sphi 0, %s109
      %s124 = sphi 0, %s110
      %s128 = sphi 0, %s128
      %s130 = sphi 0, %s128
      %s131 = sphi 0, %s130
      %s145 = sphi 0, %s131
      %s153 = sphi 0, %s155
      %s156 = sphi 0, %s153
      %s157 = sphi 0, %s156
      %s173 = sphi 0, %s157
      %s181 = sphi 0, %s183
      %s184 = sphi 0, %s181
      %s185 = sphi 0, %s184
      %s201 = sphi 0, %s185
    $region4: #{tpu_custom_call.1} parent=1 // loop_header_branch
      %22 = sbr.rel (%p20) target = $region8
    $region5: #{tpu_custom_call.1} parent=1 // loop_body
      %s24 = ssub.s32 %s19, 1
      %s25 = ssub.s32 %s19, 2
      %s32 = sadd.s32 1, %s27
      %p33 = scmp.ge.s32.totalorder %s32, 2
      %s34 = scalar_select %p33, 0, %s32
      %s35 = sadd.s32 1, %s26
      %s36 = scalar_select %p33, %s35, %s26
      %p37 = scmp.ge.s32.totalorder %s36, 2
      %s38 = scalar_select %p37, 0, %s36
      %s39 = ssub.s32 %s26, %s38
      %p40 = scmp.eq.s32.totalorder %s39, 0
      %s42 = sadd.s32 %s41, 1
      %s43 = scalar_select %p40, %s41, %s42
      %p46 = pneg %p40
      %p47 = scmp.eq.s32.totalorder %s19, 3
      %p48 = por %p46, %p47
      %p49 = scmp.ne.s32.totalorder %s41, %s44
      %p50 = scmp.eq.s32.totalorder %s19, 0
      %p51 = por %p49, %p50
      %p52 = scmp.ne.s32.totalorder %s41, %s44
      %p53 = scmp.eq.s32.totalorder %s24, 3
      %p54 = por %p52, %p53
      %p55 = scmp.ne.s32.totalorder %s44, %s45
      %p56 = scmp.eq.s32.totalorder %s24, 0
      %p57 = por %p55, %p56
      %p58 = scmp.ne.s32.totalorder %s44, %s45
      %p59 = scmp.eq.s32.totalorder %s25, 3
      %p60 = por %p58, %p59
      %p62 = scmp.ne.s32.totalorder %s45, %s61
      %p63 = scmp.eq.s32.totalorder %s25, 0
      %p64 = por %p62, %p63
      %s66 = sadd.s32 %s65, 1
      %p69 = scmp.eq.s32.totalorder %s19, 3
      %p70 = scmp.ne.s32.totalorder %s65, %s67
      %p71 = scmp.eq.s32.totalorder %s19, 0
      %p72 = por %p70, %p71
      %p73 = scmp.ne.s32.totalorder %s65, %s67
      %p74 = scmp.eq.s32.totalorder %s24, 3
      %p75 = por %p73, %p74
      %p76 = scmp.ne.s32.totalorder %s67, %s68
      %p77 = scmp.eq.s32.totalorder %s24, 0
      %p78 = por %p76, %p77
      %p79 = scmp.ne.s32.totalorder %s67, %s68
      %p80 = scmp.eq.s32.totalorder %s25, 3
      %p81 = por %p79, %p80
      %p83 = scmp.ne.s32.totalorder %s68, %s82
      %p84 = scmp.eq.s32.totalorder %s25, 0
      %p85 = por %p83, %p84
      %s87 = sadd.s32 %s86, 1
      %p90 = scmp.eq.s32.totalorder %s19, 3
      %p91 = scmp.ne.s32.totalorder %s86, %s88
      %p92 = scmp.eq.s32.totalorder %s19, 0
      %p93 = por %p91, %p92
      %p94 = scmp.ne.s32.totalorder %s86, %s88
      %p95 = scmp.eq.s32.totalorder %s24, 3
      %p96 = por %p94, %p95
      %p97 = scmp.ne.s32.totalorder %s88, %s89
      %p98 = scmp.eq.s32.totalorder %s24, 0
      %p99 = por %p97, %p98
      %p100 = scmp.ne.s32.totalorder %s88, %s89
      %p101 = scmp.eq.s32.totalorder %s25, 3
      %p102 = por %p100, %p101
      %p104 = scmp.ne.s32.totalorder %s89, %s103
      %p105 = scmp.eq.s32.totalorder %s25, 0
      %p106 = por %p104, %p105
      %s108 = sadd.s32 %s107, 1
      %p111 = scmp.eq.s32.totalorder %s19, 3
      %p112 = scmp.ne.s32.totalorder %s107, %s109
      %p113 = scmp.eq.s32.totalorder %s19, 0
      %p114 = por %p112, %p113
      %p115 = scmp.ne.s32.totalorder %s107, %s109
      %p116 = scmp.eq.s32.totalorder %s24, 3
      %p117 = por %p115, %p116
      %p118 = scmp.ne.s32.totalorder %s109, %s110
      %p119 = scmp.eq.s32.totalorder %s24, 0
      %p120 = por %p118, %p119
      %p121 = scmp.ne.s32.totalorder %s109, %s110
      %p122 = scmp.eq.s32.totalorder %s25, 3
      %p123 = por %p121, %p122
      %p125 = scmp.ne.s32.totalorder %s110, %s124
      %p126 = scmp.eq.s32.totalorder %s25, 0
      %p127 = por %p125, %p126
      %s129 = sadd.s32 %s128, 1
      %p132 = scmp.eq.s32.totalorder %s19, 3
      %p133 = scmp.ne.s32.totalorder %s128, %s130
      %p134 = scmp.eq.s32.totalorder %s19, 0
      %p135 = por %p133, %p134
      %p136 = scmp.ne.s32.totalorder %s128, %s130
      %p137 = scmp.eq.s32.totalorder %s24, 3
      %p138 = por %p136, %p137
      %p139 = scmp.ne.s32.totalorder %s130, %s131
      %p140 = scmp.eq.s32.totalorder %s24, 0
      %p141 = por %p139, %p140
      %p142 = scmp.ne.s32.totalorder %s130, %s131
      %p143 = scmp.eq.s32.totalorder %s25, 3
      %p144 = por %p142, %p143
      %p146 = scmp.ne.s32.totalorder %s131, %s145
      %p147 = scmp.eq.s32.totalorder %s25, 0
      %p148 = por %p146, %p147
      %s149 = ssub.s32 %s26, %s38
      %s150 = ssub.s32 %s27, %s34
      %s151 = sor.u32 %s149, %s150
      %p152 = scmp.eq.s32.totalorder %s151, 0
      %s154 = sadd.s32 %s153, 1
      %s155 = scalar_select %p152, %s153, %s154
      %p158 = pneg %p152
      %p159 = scmp.eq.s32.totalorder %s19, 3
      %p160 = por %p158, %p159
      %p161 = scmp.ne.s32.totalorder %s153, %s156
      %p162 = scmp.eq.s32.totalorder %s19, 0
      %p163 = por %p161, %p162
      %p164 = scmp.ne.s32.totalorder %s153, %s156
      %p165 = scmp.eq.s32.totalorder %s24, 3
      %p166 = por %p164, %p165
      %p167 = scmp.ne.s32.totalorder %s156, %s157
      %p168 = scmp.eq.s32.totalorder %s24, 0
      %p169 = por %p167, %p168
      %p170 = scmp.ne.s32.totalorder %s156, %s157
      %p171 = scmp.eq.s32.totalorder %s25, 3
      %p172 = por %p170, %p171
      %p174 = scmp.ne.s32.totalorder %s157, %s173
      %p175 = scmp.eq.s32.totalorder %s25, 0
      %p176 = por %p174, %p175
      %s177 = ssub.s32 %s26, %s38
      %s178 = ssub.s32 %s27, %s34
      %s179 = sor.u32 %s177, %s178
      %p180 = scmp.eq.s32.totalorder %s179, 0
      %s182 = sadd.s32 %s181, 1
      %s183 = scalar_select %p180, %s181, %s182
      %p186 = pneg %p180
      %p187 = scmp.eq.s32.totalorder %s19, 3
      %p188 = por %p186, %p187
      %p189 = scmp.ne.s32.totalorder %s181, %s184
      %p190 = scmp.eq.s32.totalorder %s19, 0
      %p191 = por %p189, %p190
      %p192 = scmp.ne.s32.totalorder %s181, %s184
      %p193 = scmp.eq.s32.totalorder %s24, 3
      %p194 = por %p192, %p193
      %p195 = scmp.ne.s32.totalorder %s184, %s185
      %p196 = scmp.eq.s32.totalorder %s24, 0
      %p197 = por %p195, %p196
      %p198 = scmp.ne.s32.totalorder %s184, %s185
      %p199 = scmp.eq.s32.totalorder %s25, 3
      %p200 = por %p198, %p199
      %p202 = scmp.ne.s32.totalorder %s185, %s201
      %p203 = scmp.eq.s32.totalorder %s25, 0
      %p204 = por %p202, %p203
      %p205 = scmp.le.s32.totalorder 1, %s19
      %p206 = scmp.lt.s32.totalorder %s19, 5
      %p207 = pnand %p205, %p206
      %p208 = pneg %p207
      // Predicated region
      $region9: #{tpu_custom_call.1} parent=5 // pred_check
        _
      $region10: #{tpu_custom_call.1} parent=5 // pred_check_branch
        %210 = sbr.rel (%p207) target = $region12
      $region11: #{tpu_custom_call.1} parent=5 // pred_region
        %s211 = ssub.s32 %s19, 1
        // Predicated region
        $region13: #{tpu_custom_call.1} parent=11 // pred_check
          %p212 = pneg %p78
        $region14: #{tpu_custom_call.1} parent=11 // pred_check_branch
          %214 = sbr.rel (%p212) target = $region16
        $region15: #{tpu_custom_call.1} parent=11 // pred_region
          _
        $region16: #{tpu_custom_call.1} parent=11 // pred_fallthru
          _
        // Predicated region
        $region17: #{tpu_custom_call.1} parent=11 // pred_check
          %p215 = pneg %p99
        $region18: #{tpu_custom_call.1} parent=11 // pred_check_branch
          %217 = sbr.rel (%p215) target = $region20
        $region19: #{tpu_custom_call.1} parent=11 // pred_region
          _
        $region20: #{tpu_custom_call.1} parent=11 // pred_fallthru
          _
        // Predicated region
        $region21: #{tpu_custom_call.1} parent=11 // pred_check
          %p218 = pneg %p120
        $region22: #{tpu_custom_call.1} parent=11 // pred_check_branch
          %220 = sbr.rel (%p218) target = $region24
        $region23: #{tpu_custom_call.1} parent=11 // pred_region
          _
        $region24: #{tpu_custom_call.1} parent=11 // pred_fallthru
          _
        // Predicated region
        $region25: #{tpu_custom_call.1} parent=11 // pred_check
          %p221 = pneg %p141
        $region26: #{tpu_custom_call.1} parent=11 // pred_check_branch
          %223 = sbr.rel (%p221) target = $region28
        $region27: #{tpu_custom_call.1} parent=11 // pred_region
          _
        $region28: #{tpu_custom_call.1} parent=11 // pred_fallthru
          _
      $region12: #{tpu_custom_call.1} parent=5 // pred_fallthru
        _
      %p224 = scmp.lt.s32.totalorder %s19, 4
      // Predicated region
      $region29: #{tpu_custom_call.1} parent=5 // pred_check
        %p225 = pneg %p224
      $region30: #{tpu_custom_call.1} parent=5 // pred_check_branch
        %227 = sbr.rel (%p225) target = $region32
      $region31: #{tpu_custom_call.1} parent=5 // pred_region
        // Predicated region
        $region33: #{tpu_custom_call.1} parent=31 // pred_check
          %p228 = pneg %p51
        $region34: #{tpu_custom_call.1} parent=31 // pred_check_branch
          %230 = sbr.rel (%p228) target = $region36
        $region35: #{tpu_custom_call.1} parent=31 // pred_region
          %p231 = scmp.lt.s32.totalorder %s26, 1
          %s232 = scalar_select %p231, %s26, 1
          %s233 = smul.addr %s232, 36
          %s234 = smul.addr %s233, 8
          %s235 = scalar_lea.vmem %s0, %s234
        $region36: #{tpu_custom_call.1} parent=31 // pred_fallthru
          _
      $region32: #{tpu_custom_call.1} parent=5 // pred_fallthru
        _
      %p236 = scmp.le.s32.totalorder 1, %s19
      %p237 = scmp.lt.s32.totalorder %s19, 5
      %p238 = pnand %p236, %p237
      %p239 = pneg %p238
      // Predicated region
      $region37: #{tpu_custom_call.1} parent=5 // pred_check
        _
      $region38: #{tpu_custom_call.1} parent=5 // pred_check_branch
        %241 = sbr.rel (%p238) target = $region40
      $region39: #{tpu_custom_call.1} parent=5 // pred_region
        %s242 = ssub.s32 %s19, 1
        %p243 = scmp.lt.s32.totalorder %s28, 1
        %s244 = scalar_select %p243, %s28, 1
        %s245 = smul.addr %s244, 36
        %s246 = smul.addr %s245, 8
        %s247 = scalar_lea.vmem %s0, %s246
        %p248 = pneg %p57
        %p249 = pneg %p54
        %p250 = pneg %p78
        %p251 = pneg %p75
        %p252 = pneg %p99
        %p253 = pneg %p96
        %p254 = pneg %p120
        %p255 = pneg %p117
        %p256 = pneg %p141
        %p257 = pneg %p138
        %p258 = pneg %p169
        %p259 = pneg %p166
        %s260 = sand.u32 %s156, 1
        %s261 = scalar_lea.sflag [#allocation6], %s260
        %s262 = sand.u32 %s156, 1
        %s263 = smul.addr %s262, 128
        %s264 = scalar_lea.vmem [#allocation5], %s263
        %p265 = pneg %p197
        %p266 = pneg %p194
        %s267 = sand.u32 %s184, 1
        %s268 = scalar_lea.sflag [#allocation8], %s267
        %s269 = sand.u32 %s184, 1
        %s270 = smul.addr %s269, 8
        %s271 = scalar_lea.vmem [#allocation7], %s270
        %p272 = scmp.lt.s32.totalorder %s28, 1
        %s273 = scalar_select %p272, %s28, 1
        %s274 = smul.addr %s273, 36
        %s275 = smul.addr %s274, 8
        %s276 = scalar_lea.vmem %s0, %s275
        %s277 = smul.u32 8, %s29
        %s278 = smul.u32 %s29, 8
        %s279 = smul.u32 %s278, 16
        %s280 = scalar_lea.vmem %s276, %s279
        %v281 = vld [vmem:[%s280] sm:$0xff]
        %v282 = vld [vmem:[%s280 + $0x8] sm:$0xff]
        %v283 = vld [vmem:[%s280 + $0x10] sm:$0xff]
        %v284 = vld [vmem:[%s280 + $0x18] sm:$0xff]
        %v285 = vld [vmem:[%s280 + $0x20] sm:$0xff]
        %v286 = vld [vmem:[%s280 + $0x28] sm:$0xff]
        %v287 = vld [vmem:[%s280 + $0x30] sm:$0xff]
        %v288 = vld [vmem:[%s280 + $0x38] sm:$0xff]
        %v289 = vld [vmem:[%s280 + $0x40] sm:$0xff]
        %v290 = vld [vmem:[%s280 + $0x48] sm:$0xff]
        %v291 = vld [vmem:[%s280 + $0x50] sm:$0xff]
        %v292 = vld [vmem:[%s280 + $0x58] sm:$0xff]
        %v293 = vld [vmem:[%s280 + $0x60] sm:$0xff]
        %v294 = vld [vmem:[%s280 + $0x68] sm:$0xff]
        %v295 = vld [vmem:[%s280 + $0x70] sm:$0xff]
        %v296 = vld [vmem:[%s280 + $0x78] sm:$0xff]
        %v297 = vld [vmem:[%s280 + $0x80] sm:$0xff]
        %v298 = vld [vmem:[%s280 + $0x88] sm:$0xff]
        %v299 = vld [vmem:[%s280 + $0x90] sm:$0xff]
        %v300 = vld [vmem:[%s280 + $0x98] sm:$0xff]
        %v301 = vld [vmem:[%s1] sm:$0xf]
        %v302 = vld [vmem:[%s2] sm:$0x1]
        %v304 = vlaneseq
        %v305 = vshrl.u32 %v304, 7
        %v306 = vsub.s32 0, %v305
        %v307 = vrot.slane %v302, %v306
        %vm309 = vcmask 31744
        %v311 = vsel %vm309, %v281, 0
        %v314 = vsel %vm309, %v282, 0
        %v317 = vsel %vm309, %v283, 0
        %v320 = vsel %vm309, %v284, 0
        %v323 = vsel %vm309, %v285, 0
        %v326 = vsel %vm309, %v286, 0
        %v329 = vsel %vm309, %v287, 0
        %v332 = vsel %vm309, %v288, 0
        %v335 = vsel %vm309, %v289, 0
        %v338 = vsel %vm309, %v290, 0
        %v341 = vsel %vm309, %v291, 0
        %v344 = vsel %vm309, %v292, 0
        %v347 = vsel %vm309, %v293, 0
        %v350 = vsel %vm309, %v294, 0
        %v353 = vsel %vm309, %v295, 0
        %v356 = vsel %vm309, %v296, 0
        %v359 = vsel %vm309, %v297, 0
        %v362 = vsel %vm309, %v298, 0
        %v365 = vsel %vm309, %v299, 0
        %v368 = vsel %vm309, %v300, 0
        %vm370 = vcmask 1043456
        %v372 = vsel %vm370, %v301, 0
        %374 = vmatprep.subr.mxu0 0.0
        %375 = vmatpush1.msra.mxu0 0.0
        %376 = vmatprep.subr.mxu0 0.0
        %377 = vmatpush1.msra.mxu0 0.0
        %378 = vmatprep.subr.mxu0 0.0
        %379 = vmatpush1.msra.mxu0 0.0
        %380 = vmatprep.subr.mxu0 0.0
        %381 = vmatpush1.msra.mxu0 0.0
        %382 = vmatprep.subr.mxu0 0.0
        %383 = vmatpush1.msra.mxu0 0.0
        %384 = vmatprep.subr.mxu0 0.0
        %385 = vmatpush1.msra.mxu0 0.0
        %386 = vmatprep.subr.mxu0 0.0
        %387 = vmatpush1.msra.mxu0 0.0
        %388 = vmatprep.subr.mxu0 0.0
        %389 = vmatpush1.msra.mxu0 0.0
        %390 = vmatprep.subr.mxu0 0.0
        %391 = vmatpush1.msra.mxu0 0.0
        %392 = vmatprep.subr.mxu0 0.0
        %393 = vmatpush1.msra.mxu0 0.0
        %394 = vmatprep.subr.mxu0 0.0
        %395 = vmatpush1.msra.mxu0 0.0
        %396 = vmatprep.subr.mxu0 0.0
        %397 = vmatpush1.msra.mxu0 0.0
        %398 = vmatprep.subr.mxu0 0.0
        %399 = vmatpush1.msra.mxu0 0.0
        %400 = vmatprep.subr.mxu0 0.0
        %401 = vmatpush1.msra.mxu0 0.0
        %402 = vmatprep.subr.mxu0 0.0
        %403 = vmatpush1.msra.mxu0 0.0
        %404 = vmatprep.subr.mxu0 0.0
        %405 = vmatpush1.msra.mxu0 %v372
        %406 = vmatprep.subr.mxu0 0.0
        %407 = vmatpush2.msra.mxu0 0.0
        %408 = vmatprep.subr.mxu0 0.0
        %409 = vmatpush2.msra.mxu0 0.0
        %410 = vmatprep.subr.mxu0 0.0
        %411 = vmatpush2.msra.mxu0 0.0
        %412 = vmatprep.subr.mxu0 0.0
        %413 = vmatpush2.msra.mxu0 0.0
        %414 = vmatprep.subr.mxu0 0.0
        %415 = vmatpush2.msra.mxu0 0.0
        %416 = vmatprep.subr.mxu0 0.0
        %417 = vmatpush2.msra.mxu0 0.0
        %418 = vmatprep.subr.mxu0 0.0
        %419 = vmatpush2.msra.mxu0 0.0
        %420 = vmatprep.subr.mxu0 0.0
        %421 = vmatpush2.msra.mxu0 0.0
        %422 = vmatprep.subr.mxu0 0.0
        %423 = vmatpush2.msra.mxu0 0.0
        %424 = vmatprep.subr.mxu0 0.0
        %425 = vmatpush2.msra.mxu0 0.0
        %426 = vmatprep.subr.mxu0 0.0
        %427 = vmatpush2.msra.mxu0 0.0
        %428 = vmatprep.subr.mxu0 0.0
        %429 = vmatpush2.msra.mxu0 0.0
        %430 = vmatprep.subr.mxu0 0.0
        %431 = vmatpush2.msra.mxu0 0.0
        %432 = vmatprep.subr.mxu0 0.0
        %433 = vmatpush2.msra.mxu0 0.0
        %434 = vmatprep.subr.mxu0 0.0
        %435 = vmatpush2.msra.mxu0 0.0
        %436 = vmatprep.subr.mxu0 0.0
        %437 = vmatpush2.msra.mxu0 0.0
        %438 = vmatprep.mubr.f32.mxu0 0.0
        %439 = vmatmul.mubr.f32.gmra.mxu0 %v311
        %v440 = vpop.f32.mrf.mxu0
        %v441 = vadd.f32 %v307, %v440
        %v442 = vpop.f32.mrf.mxu0
        %443 = vmatprep.mubr.f32.mxu0 0.0
        %444 = vmatmul.mubr.f32.gmra.mxu0 %v314
        %v445 = vpop.f32.mrf.mxu0
        %v446 = vadd.f32 %v307, %v445
        %v447 = vpop.f32.mrf.mxu0
        %448 = vmatprep.mubr.f32.mxu0 0.0
        %449 = vmatmul.mubr.f32.gmra.mxu0 %v317
        %v450 = vpop.f32.mrf.mxu0
        %v451 = vadd.f32 %v307, %v450
        %v452 = vpop.f32.mrf.mxu0
        %453 = vmatprep.mubr.f32.mxu0 0.0
        %454 = vmatmul.mubr.f32.gmra.mxu0 %v320
        %v455 = vpop.f32.mrf.mxu0
        %v456 = vadd.f32 %v307, %v455
        %v457 = vpop.f32.mrf.mxu0
        %458 = vmatprep.mubr.f32.mxu0 0.0
        %459 = vmatmul.mubr.f32.gmra.mxu0 %v323
        %v460 = vpop.f32.mrf.mxu0
        %v461 = vadd.f32 %v307, %v460
        %v462 = vpop.f32.mrf.mxu0
        %463 = vmatprep.mubr.f32.mxu0 0.0
        %464 = vmatmul.mubr.f32.gmra.mxu0 %v326
        %v465 = vpop.f32.mrf.mxu0
        %v466 = vadd.f32 %v307, %v465
        %v467 = vpop.f32.mrf.mxu0
        %468 = vmatprep.mubr.f32.mxu0 0.0
        %469 = vmatmul.mubr.f32.gmra.mxu0 %v329
        %v470 = vpop.f32.mrf.mxu0
        %v471 = vadd.f32 %v307, %v470
        %v472 = vpop.f32.mrf.mxu0
        %473 = vmatprep.mubr.f32.mxu0 0.0
        %474 = vmatmul.mubr.f32.gmra.mxu0 %v332
        %v475 = vpop.f32.mrf.mxu0
        %v476 = vadd.f32 %v307, %v475
        %v477 = vpop.f32.mrf.mxu0
        %478 = vmatprep.mubr.f32.mxu0 0.0
        %479 = vmatmul.mubr.f32.gmra.mxu0 %v335
        %v480 = vpop.f32.mrf.mxu0
        %v481 = vadd.f32 %v307, %v480
        %v482 = vpop.f32.mrf.mxu0
        %483 = vmatprep.mubr.f32.mxu0 0.0
        %484 = vmatmul.mubr.f32.gmra.mxu0 %v338
        %v485 = vpop.f32.mrf.mxu0
        %v486 = vadd.f32 %v307, %v485
        %v487 = vpop.f32.mrf.mxu0
        %488 = vmatprep.mubr.f32.mxu0 0.0
        %489 = vmatmul.mubr.f32.gmra.mxu0 %v341
        %v490 = vpop.f32.mrf.mxu0
        %v491 = vadd.f32 %v307, %v490
        %v492 = vpop.f32.mrf.mxu0
        %493 = vmatprep.mubr.f32.mxu0 0.0
        %494 = vmatmul.mubr.f32.gmra.mxu0 %v344
        %v495 = vpop.f32.mrf.mxu0
        %v496 = vadd.f32 %v307, %v495
        %v497 = vpop.f32.mrf.mxu0
        %498 = vmatprep.mubr.f32.mxu0 0.0
        %499 = vmatmul.mubr.f32.gmra.mxu0 %v347
        %v500 = vpop.f32.mrf.mxu0
        %v501 = vadd.f32 %v307, %v500
        %v502 = vpop.f32.mrf.mxu0
        %503 = vmatprep.mubr.f32.mxu0 0.0
        %504 = vmatmul.mubr.f32.gmra.mxu0 %v350
        %v505 = vpop.f32.mrf.mxu0
        %v506 = vadd.f32 %v307, %v505
        %v507 = vpop.f32.mrf.mxu0
        %508 = vmatprep.mubr.f32.mxu0 0.0
        %509 = vmatmul.mubr.f32.gmra.mxu0 %v353
        %v510 = vpop.f32.mrf.mxu0
        %v511 = vadd.f32 %v307, %v510
        %v512 = vpop.f32.mrf.mxu0
        %513 = vmatprep.mubr.f32.mxu0 0.0
        %514 = vmatmul.mubr.f32.gmra.mxu0 %v356
        %v515 = vpop.f32.mrf.mxu0
        %v516 = vadd.f32 %v307, %v515
        %v517 = vpop.f32.mrf.mxu0
        %518 = vmatprep.mubr.f32.mxu0 0.0
        %519 = vmatmul.mubr.f32.gmra.mxu0 %v359
        %v520 = vpop.f32.mrf.mxu0
        %v521 = vadd.f32 %v307, %v520
        %v522 = vpop.f32.mrf.mxu0
        %523 = vmatprep.mubr.f32.mxu0 0.0
        %524 = vmatmul.mubr.f32.gmra.mxu0 %v362
        %v525 = vpop.f32.mrf.mxu0
        %v526 = vadd.f32 %v307, %v525
        %v527 = vpop.f32.mrf.mxu0
        %528 = vmatprep.mubr.f32.mxu0 0.0
        %529 = vmatmul.mubr.f32.gmra.mxu0 %v365
        %v530 = vpop.f32.mrf.mxu0
        %v531 = vadd.f32 %v307, %v530
        %v532 = vpop.f32.mrf.mxu0
        %533 = vmatprep.mubr.f32.mxu0 0.0
        %534 = vmatmul.mubr.f32.gmra.mxu0 %v368
        %v535 = vpop.f32.mrf.mxu0
        %v536 = vadd.f32 %v307, %v535
        %v537 = vpop.f32.mrf.mxu0
        %538 = vdwg.mxu0
        %v539 = vmul.f32 %v441, 0.5
        %v540 = vmul.f32 %v446, 0.5
        %v541 = vmul.f32 %v451, 0.5
        %v542 = vmul.f32 %v456, 0.5
        %v543 = vmul.f32 %v461, 0.5
        %v544 = vmul.f32 %v466, 0.5
        %v545 = vmul.f32 %v471, 0.5
        %v546 = vmul.f32 %v476, 0.5
        %v547 = vmul.f32 %v481, 0.5
        %v548 = vmul.f32 %v486, 0.5
        %v549 = vmul.f32 %v491, 0.5
        %v550 = vmul.f32 %v496, 0.5
        %v551 = vmul.f32 %v501, 0.5
        %v552 = vmul.f32 %v506, 0.5
        %v553 = vmul.f32 %v511, 0.5
        %v554 = vmul.f32 %v516, 0.5
        %v555 = vmul.f32 %v521, 0.5
        %v556 = vmul.f32 %v526, 0.5
        %v557 = vmul.f32 %v531, 0.5
        %v558 = vmul.f32 %v536, 0.5
        %v559 = vmul.f32 %v441, 0.70710677
        %v560 = vmul.f32 %v446, 0.70710677
        %v561 = vmul.f32 %v451, 0.70710677
        %v562 = vmul.f32 %v456, 0.70710677
        %v563 = vmul.f32 %v461, 0.70710677
        %v564 = vmul.f32 %v466, 0.70710677
        %v565 = vmul.f32 %v471, 0.70710677
        %v566 = vmul.f32 %v476, 0.70710677
        %v567 = vmul.f32 %v481, 0.70710677
        %v568 = vmul.f32 %v486, 0.70710677
        %v569 = vmul.f32 %v491, 0.70710677
        %v570 = vmul.f32 %v496, 0.70710677
        %v571 = vmul.f32 %v501, 0.70710677
        %v572 = vmul.f32 %v506, 0.70710677
        %v573 = vmul.f32 %v511, 0.70710677
        %v574 = vmul.f32 %v516, 0.70710677
        %v575 = vmul.f32 %v521, 0.70710677
        %v576 = vmul.f32 %v526, 0.70710677
        %v577 = vmul.f32 %v531, 0.70710677
        %v578 = vmul.f32 %v536, 0.70710677
        %v579 = verf.f32.pop %v559
        %v580 = verf.f32.pop %v560
        %v581 = verf.f32.pop %v561
        %v582 = verf.f32.pop %v562
        %v583 = verf.f32.pop %v563
        %v584 = verf.f32.pop %v564
        %v585 = verf.f32.pop %v565
        %v586 = verf.f32.pop %v566
        %v587 = verf.f32.pop %v567
        %v588 = verf.f32.pop %v568
        %v589 = verf.f32.pop %v569
        %v590 = verf.f32.pop %v570
        %v591 = verf.f32.pop %v571
        %v592 = verf.f32.pop %v572
        %v593 = verf.f32.pop %v573
        %v594 = verf.f32.pop %v574
        %v595 = verf.f32.pop %v575
        %v596 = verf.f32.pop %v576
        %v597 = verf.f32.pop %v577
        %v598 = verf.f32.pop %v578
        %v599 = vadd.f32 %v579, 1.0
        %v600 = vadd.f32 %v580, 1.0
        %v601 = vadd.f32 %v581, 1.0
        %v602 = vadd.f32 %v582, 1.0
        %v603 = vadd.f32 %v583, 1.0
        %v604 = vadd.f32 %v584, 1.0
        %v605 = vadd.f32 %v585, 1.0
        %v606 = vadd.f32 %v586, 1.0
        %v607 = vadd.f32 %v587, 1.0
        %v608 = vadd.f32 %v588, 1.0
        %v609 = vadd.f32 %v589, 1.0
        %v610 = vadd.f32 %v590, 1.0
        %v611 = vadd.f32 %v591, 1.0
        %v612 = vadd.f32 %v592, 1.0
        %v613 = vadd.f32 %v593, 1.0
        %v614 = vadd.f32 %v594, 1.0
        %v615 = vadd.f32 %v595, 1.0
        %v616 = vadd.f32 %v596, 1.0
        %v617 = vadd.f32 %v597, 1.0
        %v618 = vadd.f32 %v598, 1.0
        %v619 = vmul.f32 %v539, %v599
        %v620 = vmul.f32 %v540, %v600
        %v621 = vmul.f32 %v541, %v601
        %v622 = vmul.f32 %v542, %v602
        %v623 = vmul.f32 %v543, %v603
        %v624 = vmul.f32 %v544, %v604
        %v625 = vmul.f32 %v545, %v605
        %v626 = vmul.f32 %v546, %v606
        %v627 = vmul.f32 %v547, %v607
        %v628 = vmul.f32 %v548, %v608
        %v629 = vmul.f32 %v549, %v609
        %v630 = vmul.f32 %v550, %v610
        %v631 = vmul.f32 %v551, %v611
        %v632 = vmul.f32 %v552, %v612
        %v633 = vmul.f32 %v553, %v613
        %v634 = vmul.f32 %v554, %v614
        %v635 = vmul.f32 %v555, %v615
        %v636 = vmul.f32 %v556, %v616
        %v637 = vmul.f32 %v557, %v617
        %v638 = vmul.f32 %v558, %v618
        %vm639 = vcmask 130048
        %640 = vst.msk [vmem:[#allocation2] sm:$0xff] %vm639, %v619
        %641 = vst.msk [vmem:[#allocation2 + $0x8] sm:$0xff] %vm639, %v620
        %642 = vst.msk [vmem:[#allocation2 + $0x10] sm:$0xff] %vm639, %v621
        %643 = vst.msk [vmem:[#allocation2 + $0x18] sm:$0xff] %vm639, %v622
        %644 = vst.msk [vmem:[#allocation2 + $0x20] sm:$0xff] %vm639, %v623
        %645 = vst.msk [vmem:[#allocation2 + $0x28] sm:$0xff] %vm639, %v624
        %646 = vst.msk [vmem:[#allocation2 + $0x30] sm:$0xff] %vm639, %v625
        %647 = vst.msk [vmem:[#allocation2 + $0x38] sm:$0xff] %vm639, %v626
        %648 = vst.msk [vmem:[#allocation2 + $0x40] sm:$0xff] %vm639, %v627
        %649 = vst.msk [vmem:[#allocation2 + $0x48] sm:$0xff] %vm639, %v628
        %650 = vst.msk [vmem:[#allocation2 + $0x50] sm:$0xff] %vm639, %v629
        %651 = vst.msk [vmem:[#allocation2 + $0x58] sm:$0xff] %vm639, %v630
        %652 = vst.msk [vmem:[#allocation2 + $0x60] sm:$0xff] %vm639, %v631
        %653 = vst.msk [vmem:[#allocation2 + $0x68] sm:$0xff] %vm639, %v632
        %654 = vst.msk [vmem:[#allocation2 + $0x70] sm:$0xff] %vm639, %v633
        %655 = vst.msk [vmem:[#allocation2 + $0x78] sm:$0xff] %vm639, %v634
        %656 = vst.msk [vmem:[#allocation2 + $0x80] sm:$0xff] %vm639, %v635
        %657 = vst.msk [vmem:[#allocation2 + $0x88] sm:$0xff] %vm639, %v636
        %658 = vst.msk [vmem:[#allocation2 + $0x90] sm:$0xff] %vm639, %v637
        %659 = vst.msk [vmem:[#allocation2 + $0x98] sm:$0xff] %vm639, %v638
        %p660 = scmp.eq.s32.totalorder %s29, 0
        // Predicated region
        $region41: #{tpu_custom_call.1} parent=39 // pred_check
          %p661 = pneg %p660
        $region42: #{tpu_custom_call.1} parent=39 // pred_check_branch
          %663 = sbr.rel (%p661) target = $region44
        $region43: #{tpu_custom_call.1} parent=39 // pred_region
          %664 = vst.msk [vmem:[#allocation2] sm:$0xff] %vm639, 0.0
          %665 = vst.msk [vmem:[#allocation2 + $0x8] sm:$0xff] %vm639, 0.0
        $region44: #{tpu_custom_call.1} parent=39 // pred_fallthru
          _
        %p666 = scmp.eq.s32.totalorder %s29, 1
        // Predicated region
        $region45: #{tpu_custom_call.1} parent=39 // pred_check
          %p667 = pneg %p666
        $region46: #{tpu_custom_call.1} parent=39 // pred_check_branch
          %669 = sbr.rel (%p667) target = $region48
        $region47: #{tpu_custom_call.1} parent=39 // pred_region
          %s670 = scalar_lea.vmem [#allocation2], 144
          %671 = vst.msk [vmem:[%s670] sm:$0xff] %vm639, 0.0
          %672 = vst.msk [vmem:[%s670 + $0x8] sm:$0xff] %vm639, 0.0
        $region48: #{tpu_custom_call.1} parent=39 // pred_fallthru
          _
        %v673 = vld [vmem:[#allocation2] sm:$0xff]
        %v674 = vld [vmem:[#allocation2 + $0x8] sm:$0xff]
        %v675 = vld [vmem:[#allocation2 + $0x10] sm:$0xff]
        %v676 = vld [vmem:[#allocation2 + $0x18] sm:$0xff]
        %v677 = vld [vmem:[#allocation2 + $0x20] sm:$0xff]
        %v678 = vld [vmem:[#allocation2 + $0x28] sm:$0xff]
        %v679 = vld [vmem:[#allocation2 + $0x30] sm:$0xff]
        %v680 = vld [vmem:[#allocation2 + $0x38] sm:$0xff]
        %v681 = vld [vmem:[#allocation2 + $0x40] sm:$0xff]
        %v682 = vld [vmem:[#allocation2 + $0x48] sm:$0xff]
        %v683 = vld [vmem:[#allocation2 + $0x50] sm:$0xff]
        %v684 = vld [vmem:[#allocation2 + $0x58] sm:$0xff]
        %v685 = vld [vmem:[#allocation2 + $0x60] sm:$0xff]
        %v686 = vld [vmem:[#allocation2 + $0x68] sm:$0xff]
        %v687 = vld [vmem:[#allocation2 + $0x70] sm:$0xff]
        %v688 = vld [vmem:[#allocation2 + $0x78] sm:$0xff]
        %v689 = vld [vmem:[#allocation2 + $0x80] sm:$0xff]
        %v690 = vld [vmem:[#allocation2 + $0x88] sm:$0xff]
        %v691 = vld [vmem:[#allocation2 + $0x90] sm:$0xff]
        %v692 = vld [vmem:[#allocation2 + $0x98] sm:$0xff]
        %vm713 = vcmask 1040384
        %v714 = vrot.slane %v673, 7
        %v715 = vrot.slane %v674, 7
        %v716 = vsel %vm713, %v714, %v715
        %v717 = vrot.slane %v675, 7
        %v718 = vrot.slane %v676, 7
        %v719 = vsel %vm713, %v717, %v718
        %v720 = vrot.slane %v677, 7
        %v721 = vrot.slane %v678, 7
        %v722 = vsel %vm713, %v720, %v721
        %v723 = vrot.slane %v679, 7
        %v724 = vrot.slane %v680, 7
        %v725 = vsel %vm713, %v723, %v724
        %v726 = vrot.slane %v681, 7
        %v727 = vrot.slane %v682, 7
        %v728 = vsel %vm713, %v726, %v727
        %v729 = vrot.slane %v683, 7
        %v730 = vrot.slane %v684, 7
        %v731 = vsel %vm713, %v729, %v730
        %v732 = vrot.slane %v685, 7
        %v733 = vrot.slane %v686, 7
        %v734 = vsel %vm713, %v732, %v733
        %v735 = vrot.slane %v687, 7
        %v736 = vrot.slane %v688, 7
        %v737 = vsel %vm713, %v735, %v736
        %v738 = vrot.slane %v689, 7
        %v739 = vrot.slane %v690, 7
        %v740 = vsel %vm713, %v738, %v739
        %v741 = vrot.slane %v691, 7
        %v742 = vrot.slane %v692, 7
        %v743 = vsel %vm713, %v741, %v742
        %v764 = vsel %vm713, 0.0, %v714
        %v765 = vsel %vm713, 0.0, %v717
        %v766 = vsel %vm713, 0.0, %v720
        %v767 = vsel %vm713, 0.0, %v723
        %v768 = vsel %vm713, 0.0, %v726
        %v769 = vsel %vm713, 0.0, %v729
        %v770 = vsel %vm713, 0.0, %v732
        %v771 = vsel %vm713, 0.0, %v735
        %v772 = vsel %vm713, 0.0, %v738
        %v773 = vsel %vm713, 0.0, %v741
        %774 = vst.msk [vmem:[#allocation3] sm:$0xff] %vm639, %v764
        %775 = vst.msk [vmem:[#allocation3 + $0x8] sm:$0xff] %vm639, %v716
        %776 = vst.msk [vmem:[#allocation3 + $0x10] sm:$0xff] %vm639, %v765
        %777 = vst.msk [vmem:[#allocation3 + $0x18] sm:$0xff] %vm639, %v719
        %778 = vst.msk [vmem:[#allocation3 + $0x20] sm:$0xff] %vm639, %v766
        %779 = vst.msk [vmem:[#allocation3 + $0x28] sm:$0xff] %vm639, %v722
        %780 = vst.msk [vmem:[#allocation3 + $0x30] sm:$0xff] %vm639, %v767
        %781 = vst.msk [vmem:[#allocation3 + $0x38] sm:$0xff] %vm639, %v725
        %782 = vst.msk [vmem:[#allocation3 + $0x40] sm:$0xff] %vm639, %v768
        %783 = vst.msk [vmem:[#allocation3 + $0x48] sm:$0xff] %vm639, %v728
        %784 = vst.msk [vmem:[#allocation3 + $0x50] sm:$0xff] %vm639, %v769
        %785 = vst.msk [vmem:[#allocation3 + $0x58] sm:$0xff] %vm639, %v731
        %786 = vst.msk [vmem:[#allocation3 + $0x60] sm:$0xff] %vm639, %v770
        %787 = vst.msk [vmem:[#allocation3 + $0x68] sm:$0xff] %vm639, %v734
        %788 = vst.msk [vmem:[#allocation3 + $0x70] sm:$0xff] %vm639, %v771
        %789 = vst.msk [vmem:[#allocation3 + $0x78] sm:$0xff] %vm639, %v737
        %790 = vst.msk [vmem:[#allocation3 + $0x80] sm:$0xff] %vm639, %v772
        %791 = vst.msk [vmem:[#allocation3 + $0x88] sm:$0xff] %vm639, %v740
        %792 = vst.msk [vmem:[#allocation3 + $0x90] sm:$0xff] %vm639, %v773
        %793 = vst.msk [vmem:[#allocation3 + $0x98] sm:$0xff] %vm639, %v743
        %vm794 = vcmask 1046528
        %v795 = vrot.slane %v673, 1
        %v796 = vrot.slane %v674, 1
        %v797 = vsel %vm794, %v795, %v796
        %v798 = vrot.slane %v675, 1
        %v799 = vrot.slane %v676, 1
        %v800 = vsel %vm794, %v798, %v799
        %v801 = vrot.slane %v677, 1
        %v802 = vrot.slane %v678, 1
        %v803 = vsel %vm794, %v801, %v802
        %v804 = vrot.slane %v679, 1
        %v805 = vrot.slane %v680, 1
        %v806 = vsel %vm794, %v804, %v805
        %v807 = vrot.slane %v681, 1
        %v808 = vrot.slane %v682, 1
        %v809 = vsel %vm794, %v807, %v808
        %v810 = vrot.slane %v683, 1
        %v811 = vrot.slane %v684, 1
        %v812 = vsel %vm794, %v810, %v811
        %v813 = vrot.slane %v685, 1
        %v814 = vrot.slane %v686, 1
        %v815 = vsel %vm794, %v813, %v814
        %v816 = vrot.slane %v687, 1
        %v817 = vrot.slane %v688, 1
        %v818 = vsel %vm794, %v816, %v817
        %v819 = vrot.slane %v689, 1
        %v820 = vrot.slane %v690, 1
        %v821 = vsel %vm794, %v819, %v820
        %v822 = vrot.slane %v691, 1
        %v823 = vrot.slane %v692, 1
        %v824 = vsel %vm794, %v822, %v823
        %v845 = vsel %vm794, %v796, 0.0
        %v846 = vsel %vm794, %v799, 0.0
        %v847 = vsel %vm794, %v802, 0.0
        %v848 = vsel %vm794, %v805, 0.0
        %v849 = vsel %vm794, %v808, 0.0
        %v850 = vsel %vm794, %v811, 0.0
        %v851 = vsel %vm794, %v814, 0.0
        %v852 = vsel %vm794, %v817, 0.0
        %v853 = vsel %vm794, %v820, 0.0
        %v854 = vsel %vm794, %v823, 0.0
        %855 = vst.msk [vmem:[#allocation4] sm:$0xff] %vm639, %v797
        %856 = vst.msk [vmem:[#allocation4 + $0x8] sm:$0xff] %vm639, %v845
        %857 = vst.msk [vmem:[#allocation4 + $0x10] sm:$0xff] %vm639, %v800
        %858 = vst.msk [vmem:[#allocation4 + $0x18] sm:$0xff] %vm639, %v846
        %859 = vst.msk [vmem:[#allocation4 + $0x20] sm:$0xff] %vm639, %v803
        %860 = vst.msk [vmem:[#allocation4 + $0x28] sm:$0xff] %vm639, %v847
        %861 = vst.msk [vmem:[#allocation4 + $0x30] sm:$0xff] %vm639, %v806
        %862 = vst.msk [vmem:[#allocation4 + $0x38] sm:$0xff] %vm639, %v848
        %863 = vst.msk [vmem:[#allocation4 + $0x40] sm:$0xff] %vm639, %v809
        %864 = vst.msk [vmem:[#allocation4 + $0x48] sm:$0xff] %vm639, %v849
        %865 = vst.msk [vmem:[#allocation4 + $0x50] sm:$0xff] %vm639, %v812
        %866 = vst.msk [vmem:[#allocation4 + $0x58] sm:$0xff] %vm639, %v850
        %867 = vst.msk [vmem:[#allocation4 + $0x60] sm:$0xff] %vm639, %v815
        %868 = vst.msk [vmem:[#allocation4 + $0x68] sm:$0xff] %vm639, %v851
        %869 = vst.msk [vmem:[#allocation4 + $0x70] sm:$0xff] %vm639, %v818
        %870 = vst.msk [vmem:[#allocation4 + $0x78] sm:$0xff] %vm639, %v852
        %871 = vst.msk [vmem:[#allocation4 + $0x80] sm:$0xff] %vm639, %v821
        %872 = vst.msk [vmem:[#allocation4 + $0x88] sm:$0xff] %vm639, %v853
        %873 = vst.msk [vmem:[#allocation4 + $0x90] sm:$0xff] %vm639, %v824
        %874 = vst.msk [vmem:[#allocation4 + $0x98] sm:$0xff] %vm639, %v854
        %v875 = vld [vmem:[#allocation3] sm:$0xff]
        %v876 = vld [vmem:[#allocation3 + $0x8] sm:$0xff]
        %v877 = vld [vmem:[#allocation3 + $0x10] sm:$0xff]
        %v878 = vld [vmem:[#allocation3 + $0x18] sm:$0xff]
        %v879 = vld [vmem:[#allocation3 + $0x20] sm:$0xff]
        %v880 = vld [vmem:[#allocation3 + $0x28] sm:$0xff]
        %v881 = vld [vmem:[#allocation3 + $0x30] sm:$0xff]
        %v882 = vld [vmem:[#allocation3 + $0x38] sm:$0xff]
        %v883 = vld [vmem:[#allocation3 + $0x40] sm:$0xff]
        %v884 = vld [vmem:[#allocation3 + $0x48] sm:$0xff]
        %v885 = vld [vmem:[#allocation3 + $0x50] sm:$0xff]
        %v886 = vld [vmem:[#allocation3 + $0x58] sm:$0xff]
        %v887 = vld [vmem:[#allocation3 + $0x60] sm:$0xff]
        %v888 = vld [vmem:[#allocation3 + $0x68] sm:$0xff]
        %v889 = vld [vmem:[#allocation3 + $0x70] sm:$0xff]
        %v890 = vld [vmem:[#allocation3 + $0x78] sm:$0xff]
        %v891 = vld [vmem:[%s3] sm:$0x1]
        %v892 = vlaneseq
        %v893 = vshrl.u32 %v892, 7
        %v894 = vsub.s32 0, %v893
        %v895 = vrot.slane %v891, %v894
        %v896 = vmul.f32 %v875, %v895
        %v897 = vmul.f32 %v876, %v895
        %v898 = vmul.f32 %v877, %v895
        %v899 = vmul.f32 %v878, %v895
        %v900 = vmul.f32 %v879, %v895
        %v901 = vmul.f32 %v880, %v895
        %v902 = vmul.f32 %v881, %v895
        %v903 = vmul.f32 %v882, %v895
        %v904 = vmul.f32 %v883, %v895
        %v905 = vmul.f32 %v884, %v895
        %v906 = vmul.f32 %v885, %v895
        %v907 = vmul.f32 %v886, %v895
        %v908 = vmul.f32 %v887, %v895
        %v909 = vmul.f32 %v888, %v895
        %v910 = vmul.f32 %v889, %v895
        %v911 = vmul.f32 %v890, %v895
        %v912 = vadd.f32 %v896, 0.0
        %v913 = vadd.f32 %v897, 0.0
        %v914 = vadd.f32 %v898, 0.0
        %v915 = vadd.f32 %v899, 0.0
        %v916 = vadd.f32 %v900, 0.0
        %v917 = vadd.f32 %v901, 0.0
        %v918 = vadd.f32 %v902, 0.0
        %v919 = vadd.f32 %v903, 0.0
        %v920 = vadd.f32 %v904, 0.0
        %v921 = vadd.f32 %v905, 0.0
        %v922 = vadd.f32 %v906, 0.0
        %v923 = vadd.f32 %v907, 0.0
        %v924 = vadd.f32 %v908, 0.0
        %v925 = vadd.f32 %v909, 0.0
        %v926 = vadd.f32 %v910, 0.0
        %v927 = vadd.f32 %v911, 0.0
        %v928 = vld [vmem:[#allocation2] sm:$0xff]
        %v929 = vld [vmem:[#allocation2 + $0x8] sm:$0xff]
        %v930 = vld [vmem:[#allocation2 + $0x10] sm:$0xff]
        %v931 = vld [vmem:[#allocation2 + $0x18] sm:$0xff]
        %v932 = vld [vmem:[#allocation2 + $0x20] sm:$0xff]
        %v933 = vld [vmem:[#allocation2 + $0x28] sm:$0xff]
        %v934 = vld [vmem:[#allocation2 + $0x30] sm:$0xff]
        %v935 = vld [vmem:[#allocation2 + $0x38] sm:$0xff]
        %v936 = vld [vmem:[#allocation2 + $0x40] sm:$0xff]
        %v937 = vld [vmem:[#allocation2 + $0x48] sm:$0xff]
        %v938 = vld [vmem:[#allocation2 + $0x50] sm:$0xff]
        %v939 = vld [vmem:[#allocation2 + $0x58] sm:$0xff]
        %v940 = vld [vmem:[#allocation2 + $0x60] sm:$0xff]
        %v941 = vld [vmem:[#allocation2 + $0x68] sm:$0xff]
        %v942 = vld [vmem:[#allocation2 + $0x70] sm:$0xff]
        %v943 = vld [vmem:[#allocation2 + $0x78] sm:$0xff]
        %v944 = vld [vmem:[%s3 + $0x1] sm:$0x1]
        %v945 = vlaneseq
        %v946 = vshrl.u32 %v945, 7
        %v947 = vsub.s32 0, %v946
        %v948 = vrot.slane %v944, %v947
        %v949 = vmul.f32 %v928, %v948
        %v950 = vmul.f32 %v929, %v948
        %v951 = vmul.f32 %v930, %v948
        %v952 = vmul.f32 %v931, %v948
        %v953 = vmul.f32 %v932, %v948
        %v954 = vmul.f32 %v933, %v948
        %v955 = vmul.f32 %v934, %v948
        %v956 = vmul.f32 %v935, %v948
        %v957 = vmul.f32 %v936, %v948
        %v958 = vmul.f32 %v937, %v948
        %v959 = vmul.f32 %v938, %v948
        %v960 = vmul.f32 %v939, %v948
        %v961 = vmul.f32 %v940, %v948
        %v962 = vmul.f32 %v941, %v948
        %v963 = vmul.f32 %v942, %v948
        %v964 = vmul.f32 %v943, %v948
        %v965 = vadd.f32 %v912, %v949
        %v966 = vadd.f32 %v913, %v950
        %v967 = vadd.f32 %v914, %v951
        %v968 = vadd.f32 %v915, %v952
        %v969 = vadd.f32 %v916, %v953
        %v970 = vadd.f32 %v917, %v954
        %v971 = vadd.f32 %v918, %v955
        %v972 = vadd.f32 %v919, %v956
        %v973 = vadd.f32 %v920, %v957
        %v974 = vadd.f32 %v921, %v958
        %v975 = vadd.f32 %v922, %v959
        %v976 = vadd.f32 %v923, %v960
        %v977 = vadd.f32 %v924, %v961
        %v978 = vadd.f32 %v925, %v962
        %v979 = vadd.f32 %v926, %v963
        %v980 = vadd.f32 %v927, %v964
        %v981 = vld [vmem:[#allocation4] sm:$0xff]
        %v982 = vld [vmem:[#allocation4 + $0x8] sm:$0xff]
        %v983 = vld [vmem:[#allocation4 + $0x10] sm:$0xff]
        %v984 = vld [vmem:[#allocation4 + $0x18] sm:$0xff]
        %v985 = vld [vmem:[#allocation4 + $0x20] sm:$0xff]
        %v986 = vld [vmem:[#allocation4 + $0x28] sm:$0xff]
        %v987 = vld [vmem:[#allocation4 + $0x30] sm:$0xff]
        %v988 = vld [vmem:[#allocation4 + $0x38] sm:$0xff]
        %v989 = vld [vmem:[#allocation4 + $0x40] sm:$0xff]
        %v990 = vld [vmem:[#allocation4 + $0x48] sm:$0xff]
        %v991 = vld [vmem:[#allocation4 + $0x50] sm:$0xff]
        %v992 = vld [vmem:[#allocation4 + $0x58] sm:$0xff]
        %v993 = vld [vmem:[#allocation4 + $0x60] sm:$0xff]
        %v994 = vld [vmem:[#allocation4 + $0x68] sm:$0xff]
        %v995 = vld [vmem:[#allocation4 + $0x70] sm:$0xff]
        %v996 = vld [vmem:[#allocation4 + $0x78] sm:$0xff]
        %v997 = vld [vmem:[%s3 + $0x2] sm:$0x1]
        %v998 = vlaneseq
        %v999 = vshrl.u32 %v998, 7
        %v1000 = vsub.s32 0, %v999
        %v1001 = vrot.slane %v997, %v1000
        %v1002 = vmul.f32 %v981, %v1001
        %v1003 = vmul.f32 %v982, %v1001
        %v1004 = vmul.f32 %v983, %v1001
        %v1005 = vmul.f32 %v984, %v1001
        %v1006 = vmul.f32 %v985, %v1001
        %v1007 = vmul.f32 %v986, %v1001
        %v1008 = vmul.f32 %v987, %v1001
        %v1009 = vmul.f32 %v988, %v1001
        %v1010 = vmul.f32 %v989, %v1001
        %v1011 = vmul.f32 %v990, %v1001
        %v1012 = vmul.f32 %v991, %v1001
        %v1013 = vmul.f32 %v992, %v1001
        %v1014 = vmul.f32 %v993, %v1001
        %v1015 = vmul.f32 %v994, %v1001
        %v1016 = vmul.f32 %v995, %v1001
        %v1017 = vmul.f32 %v996, %v1001
        %v1018 = vadd.f32 %v965, %v1002
        %v1019 = vadd.f32 %v966, %v1003
        %v1020 = vadd.f32 %v967, %v1004
        %v1021 = vadd.f32 %v968, %v1005
        %v1022 = vadd.f32 %v969, %v1006
        %v1023 = vadd.f32 %v970, %v1007
        %v1024 = vadd.f32 %v971, %v1008
        %v1025 = vadd.f32 %v972, %v1009
        %v1026 = vadd.f32 %v973, %v1010
        %v1027 = vadd.f32 %v974, %v1011
        %v1028 = vadd.f32 %v975, %v1012
        %v1029 = vadd.f32 %v976, %v1013
        %v1030 = vadd.f32 %v977, %v1014
        %v1031 = vadd.f32 %v978, %v1015
        %v1032 = vadd.f32 %v979, %v1016
        %v1033 = vadd.f32 %v980, %v1017
        %s1034 = scalar_lea.vmem [#allocation3], 16
        %v1035 = vld [vmem:[%s1034] sm:$0xff]
        %v1036 = vld [vmem:[%s1034 + $0x8] sm:$0xff]
        %v1037 = vld [vmem:[%s1034 + $0x10] sm:$0xff]
        %v1038 = vld [vmem:[%s1034 + $0x18] sm:$0xff]
        %v1039 = vld [vmem:[%s1034 + $0x20] sm:$0xff]
        %v1040 = vld [vmem:[%s1034 + $0x28] sm:$0xff]
        %v1041 = vld [vmem:[%s1034 + $0x30] sm:$0xff]
        %v1042 = vld [vmem:[%s1034 + $0x38] sm:$0xff]
        %v1043 = vld [vmem:[%s1034 + $0x40] sm:$0xff]
        %v1044 = vld [vmem:[%s1034 + $0x48] sm:$0xff]
        %v1045 = vld [vmem:[%s1034 + $0x50] sm:$0xff]
        %v1046 = vld [vmem:[%s1034 + $0x58] sm:$0xff]
        %v1047 = vld [vmem:[%s1034 + $0x60] sm:$0xff]
        %v1048 = vld [vmem:[%s1034 + $0x68] sm:$0xff]
        %v1049 = vld [vmem:[%s1034 + $0x70] sm:$0xff]
        %v1050 = vld [vmem:[%s1034 + $0x78] sm:$0xff]
        %v1051 = vld [vmem:[%s3 + $0x3] sm:$0x1]
        %v1052 = vlaneseq
        %v1053 = vshrl.u32 %v1052, 7
        %v1054 = vsub.s32 0, %v1053
        %v1055 = vrot.slane %v1051, %v1054
        %v1056 = vmul.f32 %v1035, %v1055
        %v1057 = vmul.f32 %v1036, %v1055
        %v1058 = vmul.f32 %v1037, %v1055
        %v1059 = vmul.f32 %v1038, %v1055
        %v1060 = vmul.f32 %v1039, %v1055
        %v1061 = vmul.f32 %v1040, %v1055
        %v1062 = vmul.f32 %v1041, %v1055
        %v1063 = vmul.f32 %v1042, %v1055
        %v1064 = vmul.f32 %v1043, %v1055
        %v1065 = vmul.f32 %v1044, %v1055
        %v1066 = vmul.f32 %v1045, %v1055
        %v1067 = vmul.f32 %v1046, %v1055
        %v1068 = vmul.f32 %v1047, %v1055
        %v1069 = vmul.f32 %v1048, %v1055
        %v1070 = vmul.f32 %v1049, %v1055
        %v1071 = vmul.f32 %v1050, %v1055
        %v1072 = vadd.f32 %v1018, %v1056
        %v1073 = vadd.f32 %v1019, %v1057
        %v1074 = vadd.f32 %v1020, %v1058
        %v1075 = vadd.f32 %v1021, %v1059
        %v1076 = vadd.f32 %v1022, %v1060
        %v1077 = vadd.f32 %v1023, %v1061
        %v1078 = vadd.f32 %v1024, %v1062
        %v1079 = vadd.f32 %v1025, %v1063
        %v1080 = vadd.f32 %v1026, %v1064
        %v1081 = vadd.f32 %v1027, %v1065
        %v1082 = vadd.f32 %v1028, %v1066
        %v1083 = vadd.f32 %v1029, %v1067
        %v1084 = vadd.f32 %v1030, %v1068
        %v1085 = vadd.f32 %v1031, %v1069
        %v1086 = vadd.f32 %v1032, %v1070
        %v1087 = vadd.f32 %v1033, %v1071
        %s1088 = scalar_lea.vmem [#allocation2], 16
        %v1089 = vld [vmem:[%s1088] sm:$0xff]
        %v1090 = vld [vmem:[%s1088 + $0x8] sm:$0xff]
        %v1091 = vld [vmem:[%s1088 + $0x10] sm:$0xff]
        %v1092 = vld [vmem:[%s1088 + $0x18] sm:$0xff]
        %v1093 = vld [vmem:[%s1088 + $0x20] sm:$0xff]
        %v1094 = vld [vmem:[%s1088 + $0x28] sm:$0xff]
        %v1095 = vld [vmem:[%s1088 + $0x30] sm:$0xff]
        %v1096 = vld [vmem:[%s1088 + $0x38] sm:$0xff]
        %v1097 = vld [vmem:[%s1088 + $0x40] sm:$0xff]
        %v1098 = vld [vmem:[%s1088 + $0x48] sm:$0xff]
        %v1099 = vld [vmem:[%s1088 + $0x50] sm:$0xff]
        %v1100 = vld [vmem:[%s1088 + $0x58] sm:$0xff]
        %v1101 = vld [vmem:[%s1088 + $0x60] sm:$0xff]
        %v1102 = vld [vmem:[%s1088 + $0x68] sm:$0xff]
        %v1103 = vld [vmem:[%s1088 + $0x70] sm:$0xff]
        %v1104 = vld [vmem:[%s1088 + $0x78] sm:$0xff]
        %v1105 = vld [vmem:[%s3 + $0x4] sm:$0x1]
        %v1106 = vlaneseq
        %v1107 = vshrl.u32 %v1106, 7
        %v1108 = vsub.s32 0, %v1107
        %v1109 = vrot.slane %v1105, %v1108
        %v1110 = vmul.f32 %v1089, %v1109
        %v1111 = vmul.f32 %v1090, %v1109
        %v1112 = vmul.f32 %v1091, %v1109
        %v1113 = vmul.f32 %v1092, %v1109
        %v1114 = vmul.f32 %v1093, %v1109
        %v1115 = vmul.f32 %v1094, %v1109
        %v1116 = vmul.f32 %v1095, %v1109
        %v1117 = vmul.f32 %v1096, %v1109
        %v1118 = vmul.f32 %v1097, %v1109
        %v1119 = vmul.f32 %v1098, %v1109
        %v1120 = vmul.f32 %v1099, %v1109
        %v1121 = vmul.f32 %v1100, %v1109
        %v1122 = vmul.f32 %v1101, %v1109
        %v1123 = vmul.f32 %v1102, %v1109
        %v1124 = vmul.f32 %v1103, %v1109
        %v1125 = vmul.f32 %v1104, %v1109
        %v1126 = vadd.f32 %v1072, %v1110
        %v1127 = vadd.f32 %v1073, %v1111
        %v1128 = vadd.f32 %v1074, %v1112
        %v1129 = vadd.f32 %v1075, %v1113
        %v1130 = vadd.f32 %v1076, %v1114
        %v1131 = vadd.f32 %v1077, %v1115
        %v1132 = vadd.f32 %v1078, %v1116
        %v1133 = vadd.f32 %v1079, %v1117
        %v1134 = vadd.f32 %v1080, %v1118
        %v1135 = vadd.f32 %v1081, %v1119
        %v1136 = vadd.f32 %v1082, %v1120
        %v1137 = vadd.f32 %v1083, %v1121
        %v1138 = vadd.f32 %v1084, %v1122
        %v1139 = vadd.f32 %v1085, %v1123
        %v1140 = vadd.f32 %v1086, %v1124
        %v1141 = vadd.f32 %v1087, %v1125
        %s1142 = scalar_lea.vmem [#allocation4], 16
        %v1143 = vld [vmem:[%s1142] sm:$0xff]
        %v1144 = vld [vmem:[%s1142 + $0x8] sm:$0xff]
        %v1145 = vld [vmem:[%s1142 + $0x10] sm:$0xff]
        %v1146 = vld [vmem:[%s1142 + $0x18] sm:$0xff]
        %v1147 = vld [vmem:[%s1142 + $0x20] sm:$0xff]
        %v1148 = vld [vmem:[%s1142 + $0x28] sm:$0xff]
        %v1149 = vld [vmem:[%s1142 + $0x30] sm:$0xff]
        %v1150 = vld [vmem:[%s1142 + $0x38] sm:$0xff]
        %v1151 = vld [vmem:[%s1142 + $0x40] sm:$0xff]
        %v1152 = vld [vmem:[%s1142 + $0x48] sm:$0xff]
        %v1153 = vld [vmem:[%s1142 + $0x50] sm:$0xff]
        %v1154 = vld [vmem:[%s1142 + $0x58] sm:$0xff]
        %v1155 = vld [vmem:[%s1142 + $0x60] sm:$0xff]
        %v1156 = vld [vmem:[%s1142 + $0x68] sm:$0xff]
        %v1157 = vld [vmem:[%s1142 + $0x70] sm:$0xff]
        %v1158 = vld [vmem:[%s1142 + $0x78] sm:$0xff]
        %v1159 = vld [vmem:[%s3 + $0x5] sm:$0x1]
        %v1160 = vlaneseq
        %v1161 = vshrl.u32 %v1160, 7
        %v1162 = vsub.s32 0, %v1161
        %v1163 = vrot.slane %v1159, %v1162
        %v1164 = vmul.f32 %v1143, %v1163
        %v1165 = vmul.f32 %v1144, %v1163
        %v1166 = vmul.f32 %v1145, %v1163
        %v1167 = vmul.f32 %v1146, %v1163
        %v1168 = vmul.f32 %v1147, %v1163
        %v1169 = vmul.f32 %v1148, %v1163
        %v1170 = vmul.f32 %v1149, %v1163
        %v1171 = vmul.f32 %v1150, %v1163
        %v1172 = vmul.f32 %v1151, %v1163
        %v1173 = vmul.f32 %v1152, %v1163
        %v1174 = vmul.f32 %v1153, %v1163
        %v1175 = vmul.f32 %v1154, %v1163
        %v1176 = vmul.f32 %v1155, %v1163
        %v1177 = vmul.f32 %v1156, %v1163
        %v1178 = vmul.f32 %v1157, %v1163
        %v1179 = vmul.f32 %v1158, %v1163
        %v1180 = vadd.f32 %v1126, %v1164
        %v1181 = vadd.f32 %v1127, %v1165
        %v1182 = vadd.f32 %v1128, %v1166
        %v1183 = vadd.f32 %v1129, %v1167
        %v1184 = vadd.f32 %v1130, %v1168
        %v1185 = vadd.f32 %v1131, %v1169
        %v1186 = vadd.f32 %v1132, %v1170
        %v1187 = vadd.f32 %v1133, %v1171
        %v1188 = vadd.f32 %v1134, %v1172
        %v1189 = vadd.f32 %v1135, %v1173
        %v1190 = vadd.f32 %v1136, %v1174
        %v1191 = vadd.f32 %v1137, %v1175
        %v1192 = vadd.f32 %v1138, %v1176
        %v1193 = vadd.f32 %v1139, %v1177
        %v1194 = vadd.f32 %v1140, %v1178
        %v1195 = vadd.f32 %v1141, %v1179
        %s1196 = scalar_lea.vmem [#allocation3], 32
        %v1197 = vld [vmem:[%s1196] sm:$0xff]
        %v1198 = vld [vmem:[%s1196 + $0x8] sm:$0xff]
        %v1199 = vld [vmem:[%s1196 + $0x10] sm:$0xff]
        %v1200 = vld [vmem:[%s1196 + $0x18] sm:$0xff]
        %v1201 = vld [vmem:[%s1196 + $0x20] sm:$0xff]
        %v1202 = vld [vmem:[%s1196 + $0x28] sm:$0xff]
        %v1203 = vld [vmem:[%s1196 + $0x30] sm:$0xff]
        %v1204 = vld [vmem:[%s1196 + $0x38] sm:$0xff]
        %v1205 = vld [vmem:[%s1196 + $0x40] sm:$0xff]
        %v1206 = vld [vmem:[%s1196 + $0x48] sm:$0xff]
        %v1207 = vld [vmem:[%s1196 + $0x50] sm:$0xff]
        %v1208 = vld [vmem:[%s1196 + $0x58] sm:$0xff]
        %v1209 = vld [vmem:[%s1196 + $0x60] sm:$0xff]
        %v1210 = vld [vmem:[%s1196 + $0x68] sm:$0xff]
        %v1211 = vld [vmem:[%s1196 + $0x70] sm:$0xff]
        %v1212 = vld [vmem:[%s1196 + $0x78] sm:$0xff]
        %v1213 = vld [vmem:[%s3 + $0x6] sm:$0x1]
        %v1214 = vlaneseq
        %v1215 = vshrl.u32 %v1214, 7
        %v1216 = vsub.s32 0, %v1215
        %v1217 = vrot.slane %v1213, %v1216
        %v1218 = vmul.f32 %v1197, %v1217
        %v1219 = vmul.f32 %v1198, %v1217
        %v1220 = vmul.f32 %v1199, %v1217
        %v1221 = vmul.f32 %v1200, %v1217
        %v1222 = vmul.f32 %v1201, %v1217
        %v1223 = vmul.f32 %v1202, %v1217
        %v1224 = vmul.f32 %v1203, %v1217
        %v1225 = vmul.f32 %v1204, %v1217
        %v1226 = vmul.f32 %v1205, %v1217
        %v1227 = vmul.f32 %v1206, %v1217
        %v1228 = vmul.f32 %v1207, %v1217
        %v1229 = vmul.f32 %v1208, %v1217
        %v1230 = vmul.f32 %v1209, %v1217
        %v1231 = vmul.f32 %v1210, %v1217
        %v1232 = vmul.f32 %v1211, %v1217
        %v1233 = vmul.f32 %v1212, %v1217
        %v1234 = vadd.f32 %v1180, %v1218
        %v1235 = vadd.f32 %v1181, %v1219
        %v1236 = vadd.f32 %v1182, %v1220
        %v1237 = vadd.f32 %v1183, %v1221
        %v1238 = vadd.f32 %v1184, %v1222
        %v1239 = vadd.f32 %v1185, %v1223
        %v1240 = vadd.f32 %v1186, %v1224
        %v1241 = vadd.f32 %v1187, %v1225
        %v1242 = vadd.f32 %v1188, %v1226
        %v1243 = vadd.f32 %v1189, %v1227
        %v1244 = vadd.f32 %v1190, %v1228
        %v1245 = vadd.f32 %v1191, %v1229
        %v1246 = vadd.f32 %v1192, %v1230
        %v1247 = vadd.f32 %v1193, %v1231
        %v1248 = vadd.f32 %v1194, %v1232
        %v1249 = vadd.f32 %v1195, %v1233
        %s1250 = scalar_lea.vmem [#allocation2], 32
        %v1251 = vld [vmem:[%s1250] sm:$0xff]
        %v1252 = vld [vmem:[%s1250 + $0x8] sm:$0xff]
        %v1253 = vld [vmem:[%s1250 + $0x10] sm:$0xff]
        %v1254 = vld [vmem:[%s1250 + $0x18] sm:$0xff]
        %v1255 = vld [vmem:[%s1250 + $0x20] sm:$0xff]
        %v1256 = vld [vmem:[%s1250 + $0x28] sm:$0xff]
        %v1257 = vld [vmem:[%s1250 + $0x30] sm:$0xff]
        %v1258 = vld [vmem:[%s1250 + $0x38] sm:$0xff]
        %v1259 = vld [vmem:[%s1250 + $0x40] sm:$0xff]
        %v1260 = vld [vmem:[%s1250 + $0x48] sm:$0xff]
        %v1261 = vld [vmem:[%s1250 + $0x50] sm:$0xff]
        %v1262 = vld [vmem:[%s1250 + $0x58] sm:$0xff]
        %v1263 = vld [vmem:[%s1250 + $0x60] sm:$0xff]
        %v1264 = vld [vmem:[%s1250 + $0x68] sm:$0xff]
        %v1265 = vld [vmem:[%s1250 + $0x70] sm:$0xff]
        %v1266 = vld [vmem:[%s1250 + $0x78] sm:$0xff]
        %v1267 = vld [vmem:[%s3 + $0x7] sm:$0x1]
        %v1268 = vlaneseq
        %v1269 = vshrl.u32 %v1268, 7
        %v1270 = vsub.s32 0, %v1269
        %v1271 = vrot.slane %v1267, %v1270
        %v1272 = vmul.f32 %v1251, %v1271
        %v1273 = vmul.f32 %v1252, %v1271
        %v1274 = vmul.f32 %v1253, %v1271
        %v1275 = vmul.f32 %v1254, %v1271
        %v1276 = vmul.f32 %v1255, %v1271
        %v1277 = vmul.f32 %v1256, %v1271
        %v1278 = vmul.f32 %v1257, %v1271
        %v1279 = vmul.f32 %v1258, %v1271
        %v1280 = vmul.f32 %v1259, %v1271
        %v1281 = vmul.f32 %v1260, %v1271
        %v1282 = vmul.f32 %v1261, %v1271
        %v1283 = vmul.f32 %v1262, %v1271
        %v1284 = vmul.f32 %v1263, %v1271
        %v1285 = vmul.f32 %v1264, %v1271
        %v1286 = vmul.f32 %v1265, %v1271
        %v1287 = vmul.f32 %v1266, %v1271
        %v1288 = vadd.f32 %v1234, %v1272
        %v1289 = vadd.f32 %v1235, %v1273
        %v1290 = vadd.f32 %v1236, %v1274
        %v1291 = vadd.f32 %v1237, %v1275
        %v1292 = vadd.f32 %v1238, %v1276
        %v1293 = vadd.f32 %v1239, %v1277
        %v1294 = vadd.f32 %v1240, %v1278
        %v1295 = vadd.f32 %v1241, %v1279
        %v1296 = vadd.f32 %v1242, %v1280
        %v1297 = vadd.f32 %v1243, %v1281
        %v1298 = vadd.f32 %v1244, %v1282
        %v1299 = vadd.f32 %v1245, %v1283
        %v1300 = vadd.f32 %v1246, %v1284
        %v1301 = vadd.f32 %v1247, %v1285
        %v1302 = vadd.f32 %v1248, %v1286
        %v1303 = vadd.f32 %v1249, %v1287
        %s1304 = scalar_lea.vmem [#allocation4], 32
        %v1305 = vld [vmem:[%s1304] sm:$0xff]
        %v1306 = vld [vmem:[%s1304 + $0x8] sm:$0xff]
        %v1307 = vld [vmem:[%s1304 + $0x10] sm:$0xff]
        %v1308 = vld [vmem:[%s1304 + $0x18] sm:$0xff]
        %v1309 = vld [vmem:[%s1304 + $0x20] sm:$0xff]
        %v1310 = vld [vmem:[%s1304 + $0x28] sm:$0xff]
        %v1311 = vld [vmem:[%s1304 + $0x30] sm:$0xff]
        %v1312 = vld [vmem:[%s1304 + $0x38] sm:$0xff]
        %v1313 = vld [vmem:[%s1304 + $0x40] sm:$0xff]
        %v1314 = vld [vmem:[%s1304 + $0x48] sm:$0xff]
        %v1315 = vld [vmem:[%s1304 + $0x50] sm:$0xff]
        %v1316 = vld [vmem:[%s1304 + $0x58] sm:$0xff]
        %v1317 = vld [vmem:[%s1304 + $0x60] sm:$0xff]
        %v1318 = vld [vmem:[%s1304 + $0x68] sm:$0xff]
        %v1319 = vld [vmem:[%s1304 + $0x70] sm:$0xff]
        %v1320 = vld [vmem:[%s1304 + $0x78] sm:$0xff]
        %v1321 = vld [vmem:[%s3 + $0x8] sm:$0x1]
        %v1322 = vlaneseq
        %v1323 = vshrl.u32 %v1322, 7
        %v1324 = vsub.s32 0, %v1323
        %v1325 = vrot.slane %v1321, %v1324
        %v1326 = vmul.f32 %v1305, %v1325
        %v1327 = vmul.f32 %v1306, %v1325
        %v1328 = vmul.f32 %v1307, %v1325
        %v1329 = vmul.f32 %v1308, %v1325
        %v1330 = vmul.f32 %v1309, %v1325
        %v1331 = vmul.f32 %v1310, %v1325
        %v1332 = vmul.f32 %v1311, %v1325
        %v1333 = vmul.f32 %v1312, %v1325
        %v1334 = vmul.f32 %v1313, %v1325
        %v1335 = vmul.f32 %v1314, %v1325
        %v1336 = vmul.f32 %v1315, %v1325
        %v1337 = vmul.f32 %v1316, %v1325
        %v1338 = vmul.f32 %v1317, %v1325
        %v1339 = vmul.f32 %v1318, %v1325
        %v1340 = vmul.f32 %v1319, %v1325
        %v1341 = vmul.f32 %v1320, %v1325
        %v1342 = vadd.f32 %v1288, %v1326
        %v1343 = vadd.f32 %v1289, %v1327
        %v1344 = vadd.f32 %v1290, %v1328
        %v1345 = vadd.f32 %v1291, %v1329
        %v1346 = vadd.f32 %v1292, %v1330
        %v1347 = vadd.f32 %v1293, %v1331
        %v1348 = vadd.f32 %v1294, %v1332
        %v1349 = vadd.f32 %v1295, %v1333
        %v1350 = vadd.f32 %v1296, %v1334
        %v1351 = vadd.f32 %v1297, %v1335
        %v1352 = vadd.f32 %v1298, %v1336
        %v1353 = vadd.f32 %v1299, %v1337
        %v1354 = vadd.f32 %v1300, %v1338
        %v1355 = vadd.f32 %v1301, %v1339
        %v1356 = vadd.f32 %v1302, %v1340
        %v1357 = vadd.f32 %v1303, %v1341
        %v1358 = vld [vmem:[%s4] sm:$0x1]
        %v1360 = vlaneseq
        %v1361 = vshrl.u32 %v1360, 7
        %v1362 = vsub.s32 0, %v1361
        %v1363 = vrot.slane %v1358, %v1362
        %v1365 = vadd.f32 %v1342, %v1363
        %v1366 = vadd.f32 %v1343, %v1363
        %v1367 = vadd.f32 %v1344, %v1363
        %v1368 = vadd.f32 %v1345, %v1363
        %v1369 = vadd.f32 %v1346, %v1363
        %v1370 = vadd.f32 %v1347, %v1363
        %v1371 = vadd.f32 %v1348, %v1363
        %v1372 = vadd.f32 %v1349, %v1363
        %v1373 = vadd.f32 %v1350, %v1363
        %v1374 = vadd.f32 %v1351, %v1363
        %v1375 = vadd.f32 %v1352, %v1363
        %v1376 = vadd.f32 %v1353, %v1363
        %v1377 = vadd.f32 %v1354, %v1363
        %v1378 = vadd.f32 %v1355, %v1363
        %v1379 = vadd.f32 %v1356, %v1363
        %v1380 = vadd.f32 %v1357, %v1363
        %v1381 = vmul.f32 %v1365, 0.5
        %v1382 = vmul.f32 %v1366, 0.5
        %v1383 = vmul.f32 %v1367, 0.5
        %v1384 = vmul.f32 %v1368, 0.5
        %v1385 = vmul.f32 %v1369, 0.5
        %v1386 = vmul.f32 %v1370, 0.5
        %v1387 = vmul.f32 %v1371, 0.5
        %v1388 = vmul.f32 %v1372, 0.5
        %v1389 = vmul.f32 %v1373, 0.5
        %v1390 = vmul.f32 %v1374, 0.5
        %v1391 = vmul.f32 %v1375, 0.5
        %v1392 = vmul.f32 %v1376, 0.5
        %v1393 = vmul.f32 %v1377, 0.5
        %v1394 = vmul.f32 %v1378, 0.5
        %v1395 = vmul.f32 %v1379, 0.5
        %v1396 = vmul.f32 %v1380, 0.5
        %v1397 = vmul.f32 %v1365, 0.70710677
        %v1398 = vmul.f32 %v1366, 0.70710677
        %v1399 = vmul.f32 %v1367, 0.70710677
        %v1400 = vmul.f32 %v1368, 0.70710677
        %v1401 = vmul.f32 %v1369, 0.70710677
        %v1402 = vmul.f32 %v1370, 0.70710677
        %v1403 = vmul.f32 %v1371, 0.70710677
        %v1404 = vmul.f32 %v1372, 0.70710677
        %v1405 = vmul.f32 %v1373, 0.70710677
        %v1406 = vmul.f32 %v1374, 0.70710677
        %v1407 = vmul.f32 %v1375, 0.70710677
        %v1408 = vmul.f32 %v1376, 0.70710677
        %v1409 = vmul.f32 %v1377, 0.70710677
        %v1410 = vmul.f32 %v1378, 0.70710677
        %v1411 = vmul.f32 %v1379, 0.70710677
        %v1412 = vmul.f32 %v1380, 0.70710677
        %v1413 = verf.f32.pop %v1397
        %v1414 = verf.f32.pop %v1398
        %v1415 = verf.f32.pop %v1399
        %v1416 = verf.f32.pop %v1400
        %v1417 = verf.f32.pop %v1401
        %v1418 = verf.f32.pop %v1402
        %v1419 = verf.f32.pop %v1403
        %v1420 = verf.f32.pop %v1404
        %v1421 = verf.f32.pop %v1405
        %v1422 = verf.f32.pop %v1406
        %v1423 = verf.f32.pop %v1407
        %v1424 = verf.f32.pop %v1408
        %v1425 = verf.f32.pop %v1409
        %v1426 = verf.f32.pop %v1410
        %v1427 = verf.f32.pop %v1411
        %v1428 = verf.f32.pop %v1412
        %v1429 = vadd.f32 %v1413, 1.0
        %v1430 = vadd.f32 %v1414, 1.0
        %v1431 = vadd.f32 %v1415, 1.0
        %v1432 = vadd.f32 %v1416, 1.0
        %v1433 = vadd.f32 %v1417, 1.0
        %v1434 = vadd.f32 %v1418, 1.0
        %v1435 = vadd.f32 %v1419, 1.0
        %v1436 = vadd.f32 %v1420, 1.0
        %v1437 = vadd.f32 %v1421, 1.0
        %v1438 = vadd.f32 %v1422, 1.0
        %v1439 = vadd.f32 %v1423, 1.0
        %v1440 = vadd.f32 %v1424, 1.0
        %v1441 = vadd.f32 %v1425, 1.0
        %v1442 = vadd.f32 %v1426, 1.0
        %v1443 = vadd.f32 %v1427, 1.0
        %v1444 = vadd.f32 %v1428, 1.0
        %v1445 = vmul.f32 %v1381, %v1429
        %v1446 = vmul.f32 %v1382, %v1430
        %v1447 = vmul.f32 %v1383, %v1431
        %v1448 = vmul.f32 %v1384, %v1432
        %v1449 = vmul.f32 %v1385, %v1433
        %v1450 = vmul.f32 %v1386, %v1434
        %v1451 = vmul.f32 %v1387, %v1435
        %v1452 = vmul.f32 %v1388, %v1436
        %v1453 = vmul.f32 %v1389, %v1437
        %v1454 = vmul.f32 %v1390, %v1438
        %v1455 = vmul.f32 %v1391, %v1439
        %v1456 = vmul.f32 %v1392, %v1440
        %v1457 = vmul.f32 %v1393, %v1441
        %v1458 = vmul.f32 %v1394, %v1442
        %v1459 = vmul.f32 %v1395, %v1443
        %v1460 = vmul.f32 %v1396, %v1444
        %v1461 = vsel %vm639, %v1445, 0.0
        %v1462 = vsel %vm639, %v1446, 0.0
        %v1463 = vadd.f32 %v1461, %v1462
        %v1464 = vsel %vm639, %v1447, 0.0
        %v1465 = vadd.f32 %v1463, %v1464
        %v1466 = vsel %vm639, %v1448, 0.0
        %v1467 = vadd.f32 %v1465, %v1466
        %v1468 = vsel %vm639, %v1449, 0.0
        %v1469 = vadd.f32 %v1467, %v1468
        %v1470 = vsel %vm639, %v1450, 0.0
        %v1471 = vadd.f32 %v1469, %v1470
        %v1472 = vsel %vm639, %v1451, 0.0
        %v1473 = vadd.f32 %v1471, %v1472
        %v1474 = vsel %vm639, %v1452, 0.0
        %v1475 = vadd.f32 %v1473, %v1474
        %v1476 = vsel %vm639, %v1453, 0.0
        %v1477 = vadd.f32 %v1475, %v1476
        %v1478 = vsel %vm639, %v1454, 0.0
        %v1479 = vadd.f32 %v1477, %v1478
        %v1480 = vsel %vm639, %v1455, 0.0
        %v1481 = vadd.f32 %v1479, %v1480
        %v1482 = vsel %vm639, %v1456, 0.0
        %v1483 = vadd.f32 %v1481, %v1482
        %v1484 = vsel %vm639, %v1457, 0.0
        %v1485 = vadd.f32 %v1483, %v1484
        %v1486 = vsel %vm639, %v1458, 0.0
        %v1487 = vadd.f32 %v1485, %v1486
        %v1488 = vsel %vm639, %v1459, 0.0
        %v1489 = vadd.f32 %v1487, %v1488
        %v1490 = vsel %vm639, %v1460, 0.0
        %v1491 = vadd.f32 %v1489, %v1490
        %v1492 = vrot.slane %v1491, 4
        %v1493 = vadd.f32 %v1491, %v1492
        %v1494 = vrot.slane %v1493, 2
        %v1495 = vadd.f32 %v1493, %v1494
        %v1496 = vrot.slane %v1495, 1
        %v1497 = vadd.f32 %v1495, %v1496
        %1498 = vst.msk [vmem:[%s271] sm:$0xff] %vm639, %v1497
        %1499 = vst.msk [vmem:[%s264] sm:$0xff] %vm639, %v1445
        %1500 = vst.msk [vmem:[%s264 + $0x8] sm:$0xff] %vm639, %v1446
        %1501 = vst.msk [vmem:[%s264 + $0x10] sm:$0xff] %vm639, %v1447
        %1502 = vst.msk [vmem:[%s264 + $0x18] sm:$0xff] %vm639, %v1448
        %1503 = vst.msk [vmem:[%s264 + $0x20] sm:$0xff] %vm639, %v1449
        %1504 = vst.msk [vmem:[%s264 + $0x28] sm:$0xff] %vm639, %v1450
        %1505 = vst.msk [vmem:[%s264 + $0x30] sm:$0xff] %vm639, %v1451
        %1506 = vst.msk [vmem:[%s264 + $0x38] sm:$0xff] %vm639, %v1452
        %1507 = vst.msk [vmem:[%s264 + $0x40] sm:$0xff] %vm639, %v1453
        %1508 = vst.msk [vmem:[%s264 + $0x48] sm:$0xff] %vm639, %v1454
        %1509 = vst.msk [vmem:[%s264 + $0x50] sm:$0xff] %vm639, %v1455
        %1510 = vst.msk [vmem:[%s264 + $0x58] sm:$0xff] %vm639, %v1456
        %1511 = vst.msk [vmem:[%s264 + $0x60] sm:$0xff] %vm639, %v1457
        %1512 = vst.msk [vmem:[%s264 + $0x68] sm:$0xff] %vm639, %v1458
        %1513 = vst.msk [vmem:[%s264 + $0x70] sm:$0xff] %vm639, %v1459
        %1514 = vst.msk [vmem:[%s264 + $0x78] sm:$0xff] %vm639, %v1460
        %s1515 = sand.u32 %s156, 1
        %s1516 = scalar_lea.sflag [#allocation6], %s1515
        %s1517 = sand.u32 %s156, 1
        %s1518 = smul.addr %s1517, 128
        %s1519 = scalar_lea.vmem [#allocation5], %s1518
        %s1520 = sand.u32 %s184, 1
        %s1521 = scalar_lea.sflag [#allocation8], %s1520
        %s1522 = sand.u32 %s184, 1
        %s1523 = smul.addr %s1522, 8
        %s1524 = scalar_lea.vmem [#allocation7], %s1523
        // Predicated region
        $region49: #{tpu_custom_call.1} parent=39 // pred_check
          %p1525 = pneg %p166
        $region50: #{tpu_custom_call.1} parent=39 // pred_check_branch
          %1527 = sbr.rel (%p1525) target = $region52
        $region51: #{tpu_custom_call.1} parent=39 // pred_region
          %s1528 = smul.u32 8, %s29
          %s1530 = ssub.s32 2048, 2048
          %1531 = vsyncadd %s1516, %s1530
          %s1532 = smul.addr %s1528, 2
          %s1533 = smul.addr %s28, 32
          %s1534 = sadd.s32 %s1532, %s1533
          %s1535 = smul.addr %s1534, 128
          %s1536 = scalar_lea.hbm %s5, %s1535
          %s1537 = sshll.u32 %s1519, 4
          %s1538 = int_to_ptr.vmem [resolvable:$true] %s1537
          %1543 = dma.vmem_to_hbm [thread:$0]  %s1538, 2048, %s1536, %s1516, 128, 128, 8
        $region52: #{tpu_custom_call.1} parent=39 // pred_fallthru
          _
        // Predicated region
        $region53: #{tpu_custom_call.1} parent=39 // pred_check
          %p1544 = pneg %p194
        $region54: #{tpu_custom_call.1} parent=39 // pred_check_branch
          %1546 = sbr.rel (%p1544) target = $region56
        $region55: #{tpu_custom_call.1} parent=39 // pred_region
          %s1548 = ssub.s32 128, 128
          %1549 = vsyncadd %s1521, %s1548
          %s1550 = smul.addr %s28, 2
          %s1551 = sadd.s32 %s29, %s1550
          %s1552 = smul.addr %s1551, 128
          %s1553 = scalar_lea.hbm %s6, %s1552
          %s1555 = sshll.u32 %s1524, 4
          %s1556 = int_to_ptr.vmem [resolvable:$true] %s1555
          %1558 = dma.vmem_to_hbm [thread:$0]  %s1556, 128, %s1553, %s1521
        $region56: #{tpu_custom_call.1} parent=39 // pred_fallthru
          _
      $region40: #{tpu_custom_call.1} parent=5 // pred_fallthru
        _
      %p1559 = scmp.le.s32.totalorder 2, %s19
      // Predicated region
      $region57: #{tpu_custom_call.1} parent=5 // pred_check
        %p1560 = pneg %p1559
      $region58: #{tpu_custom_call.1} parent=5 // pred_check_branch
        %1562 = sbr.rel (%p1560) target = $region60
      $region59: #{tpu_custom_call.1} parent=5 // pred_region
        %s1563 = ssub.s32 %s19, 2
        // Predicated region
        $region61: #{tpu_custom_call.1} parent=59 // pred_check
          %p1564 = pneg %p172
        $region62: #{tpu_custom_call.1} parent=59 // pred_check_branch
          %1566 = sbr.rel (%p1564) target = $region64
        $region63: #{tpu_custom_call.1} parent=59 // pred_region
          %s1567 = sand.u32 %s157, 1
          %s1568 = scalar_lea.sflag [#allocation6], %s1567
          %s1569 = sand.u32 %s157, 1
          %s1570 = smul.addr %s1569, 128
          %s1571 = scalar_lea.vmem [#allocation5], %s1570
          %1572 = dma.done %s1568, 2048
        $region64: #{tpu_custom_call.1} parent=59 // pred_fallthru
          _
        // Predicated region
        $region65: #{tpu_custom_call.1} parent=59 // pred_check
          %p1573 = pneg %p200
        $region66: #{tpu_custom_call.1} parent=59 // pred_check_branch
          %1575 = sbr.rel (%p1573) target = $region68
        $region67: #{tpu_custom_call.1} parent=59 // pred_region
          %s1576 = sand.u32 %s185, 1
          %s1577 = scalar_lea.sflag [#allocation8], %s1576
          %s1578 = sand.u32 %s185, 1
          %s1579 = smul.addr %s1578, 8
          %s1580 = scalar_lea.vmem [#allocation7], %s1579
          %1581 = dma.done %s1577, 128
        $region68: #{tpu_custom_call.1} parent=59 // pred_fallthru
          _
      $region60: #{tpu_custom_call.1} parent=5 // pred_fallthru
        _
    $region6: #{tpu_custom_call.1} parent=1 // loop_footer
      %s23 = sadd.s32 1, %s19
    $region7: #{tpu_custom_call.1} parent=1 // loop_footer_branch
      %18 = sbr.rel target = $region3
    $region8: #{tpu_custom_call.1} parent=1 // loop_exit
      _
    %1582 = vsyncpa [#allocation6], 1
    %s1583 = scalar_lea.sflag [#allocation6], 1
    %1584 = vsyncpa %s1583, 1
    %1585 = vsyncpa [#allocation8], 1
    %s1586 = scalar_lea.sflag [#allocation8], 1
    %1587 = vsyncpa %s1586, 1

</llo_original>
